<compile_context>
chip_gen: v7x
topology: tpu7x:2x2x1
jax: 0.10.0
libtpu: 0.0.40
codegen_flags: <defaults>
</compile_context>

<pallas_src>
import jax
import jax.numpy as jnp
from jax.experimental import pallas as pl
from jax.experimental.pallas import tpu as pltpu

EPS = 1e-5
LANES = 128
SUBLANES = 8


def _round_up(x, m):
    return (x + m - 1) // m * m


def _vmem_budget_bytes():
    """Generation-aware VMEM budget (also used as vmem_limit_bytes)."""
    try:
        cap = int(pltpu.get_tpu_info().vmem_capacity_bytes)
    except Exception:
        cap = 64 << 20          # v7x per-TC physical: safe lower bound everywhere
    return min(cap * 3 // 4, 96 << 20)


def _pass1_vmem(tile_r, w, cin3, cout_pad):
    tile_m = tile_r * w
    in_tile = tile_r * (w + 2) * cin3 * 2          # bf16, double-buffered
    y_tile = tile_m * cout_pad * 2                 # bf16, double-buffered
    stats = 2 * cout_pad * 4
    w_blk = 3 * cin3 * cout_pad * 2                # single-buffered
    acc = tile_m * cout_pad * 4                    # f32 accumulator
    lhs = 2 * tile_m * cin3 * 2                    # shifted-slice copies
    return 2 * (in_tile + y_tile + stats) + w_blk + acc + lhs


def _pass2_vmem(tile_hw, cout_pad):
    y_tile = tile_hw * cout_pad * 2                # bf16 in, double-buffered
    o_tile = tile_hw * cout_pad * 4                # out (<= f32), double-buffered
    tmp = 2 * tile_hw * cout_pad * 4               # f32 transpose working set
    return 2 * (y_tile + o_tile) + tmp + 4 * cout_pad * 4


def _pick_tile_r(n, h, w, cin3, cout_pad, budget):
    """Rows per pass-1 block: largest divisor of H fitting the VMEM budget,
    keeping >= 2 total grid steps so v7x's two cores both get work."""
    legal = [d for d in range(1, h + 1)
             if h % d == 0 and ((d * w) % SUBLANES == 0 or d == h)]
    min_steps = 2 if n == 1 else 1
    fit = [d for d in legal if _pass1_vmem(d, w, cin3, cout_pad) <= budget]
    if not fit:
        return legal[0]
    pref = [d for d in fit if h // d >= min_steps]
    return max(pref) if pref else max(fit)


def _pick_tile_hw(n, hw, cout_pad, budget):
    """Pass-2 tile over H*W: 128-multiple divisor (lane-dense transposed store)
    that fits the VMEM budget; falls back to the full image."""
    legal = [t for t in range(LANES, hw + 1, LANES) if hw % t == 0]
    if not legal:
        return hw                                  # full dim: always legal
    min_steps = 2 if n == 1 else 1
    fit = [t for t in legal if _pass2_vmem(t, cout_pad) <= budget] or legal[:1]
    pref = [t for t in fit if hw // t >= min_steps]
    return max(pref) if pref else max(fit)


def _make_conv_stats_kernel(tile_r, width, cin3, cout_pad):
    tile_m = tile_r * width

    def kernel(xv_ref, w_ref, y_ref, stats_ref):
        # xv_ref   : (1, tile_r, width+2, 3*Cin) bf16  (vertical taps in K)
        # w_ref    : (3, 3*Cin, cout_pad)        bf16  (constant block)
        # y_ref    : (1, tile_m, cout_pad)       bf16
        # stats_ref: (1, 2, cout_pad)            f32   per-tile [sum; sumsq]
        acc = jnp.zeros((tile_m, cout_pad), jnp.float32)
        for kw in range(3):                        # 3 fat-K matmuls
            lhs = xv_ref[0, :, kw:kw + width, :].reshape(tile_m, cin3)
            acc = acc + jnp.dot(lhs, w_ref[kw],
                                preferred_element_type=jnp.float32)
        y_ref[0] = acc.astype(y_ref.dtype)
        stats_ref[0, 0:1, :] = jnp.sum(acc, axis=0, keepdims=True)
        stats_ref[0, 1:2, :] = jnp.sum(acc * acc, axis=0, keepdims=True)

    return kernel


def _make_bn_relu_kernel(cout):
    def kernel(y_ref, s_ref, t_ref, o_ref):
        # y_ref: (1, tile_hw, cout_pad) bf16 ; s/t: (cout, 1) f32
        # o_ref: (1, cout, tile_hw)  -- channel-major (NCHW-ready), un-padded
        yt = jnp.transpose(y_ref[0].astype(jnp.float32), (1, 0))
        z = yt[:cout, :] * s_ref[...] + t_ref[...]
        o_ref[0] = jnp.maximum(z, 0.0).astype(o_ref.dtype)

    return kernel


def vgg16_conv_block(x_nchw, conv_w, conv_b, bn_gamma, bn_beta):
    """Conv2d(3x3, s=1, p=1) -> BatchNorm2d (batch stats) -> ReLU, NCHW."""
    # A per-channel conv bias is exactly cancelled by train-mode BN's mean
    # subtraction, so it is dropped.  TODO(synk): re-add the bias if eval-mode
    # (running-statistic) BN is ever needed.
    del conv_b
    n, cin, h, w = x_nchw.shape
    cout = conv_w.shape[0]
    assert conv_w.shape[1:] == (cin, 3, 3), "kernel expects a 3x3 conv"
    cout_pad = _round_up(cout, LANES)
    cin3 = 3 * cin
    hw = h * w
    m = n * hw
    out_dtype = x_nchw.dtype
    budget = _vmem_budget_bytes()

    # NCHW -> NHWC once; bf16 inputs for the MXU; pad spatially once.
    x_nhwc = jnp.transpose(x_nchw, (0, 2, 3, 1)).astype(jnp.bfloat16)
    xp = jnp.pad(x_nhwc, ((0, 0), (1, 1), (1, 1), (0, 0)))      # (N,H+2,W+2,C)
    # Vertical taps packed next to channels: xv[n,h,col,kh*Cin+c]=xp[n,h+kh,col,c]
    xv = jnp.stack([xp[:, t:t + h] for t in range(3)], axis=3)  # (N,H,W+2,3,C)
    xv = xv.reshape(n, h, w + 2, cin3)

    # (Cout,Cin,kh,kw) -> (kw, kh*Cin, Cout_pad), bf16, lane-padded.
    wk = jnp.transpose(conv_w, (3, 2, 1, 0)).reshape(3, cin3, cout)
    wk = jnp.pad(wk, ((0, 0), (0, 0), (0, cout_pad - cout))).astype(jnp.bfloat16)

    tile_r = _pick_tile_r(n, h, w, cin3, cout_pad, budget)
    tile_m = tile_r * w
    g1 = h // tile_r

    w_spec = pl.BlockSpec((3, cin3, cout_pad), lambda b, i: (0, 0, 0))
    if wk.size * 2 >= (1 << 20):
        # Constant block: a second pipeline buffer only wastes VMEM.
        w_spec = pl.BlockSpec((3, cin3, cout_pad), lambda b, i: (0, 0, 0),
                              pipeline_mode=pl.Buffered(1))

    cost1 = pl.CostEstimate(
        flops=2 * m * 3 * cin3 * cout_pad,
        transcendentals=0,
        bytes_accessed=xv.size * 2 + wk.size * 2 + m * cout_pad * 2,
    )

    # Pass 1: conv-as-matmul (implicit horizontal im2col) + per-tile BN stats.
    y2d, part = pl.pallas_call(
        _make_conv_stats_kernel(tile_r, w, cin3, cout_pad),
        out_shape=(
            jax.ShapeDtypeStruct((n, hw, cout_pad), jnp.bfloat16),
            jax.ShapeDtypeStruct((n * g1, 2, cout_pad), jnp.float32),
        ),
        grid=(n, g1),
        in_specs=[
            pl.BlockSpec((1, tile_r, w + 2, cin3), lambda b, i: (b, i, 0, 0)),
            w_spec,
        ],
        out_specs=(
            pl.BlockSpec((1, tile_m, cout_pad), lambda b, i: (b, i, 0)),
            pl.BlockSpec((1, 2, cout_pad), lambda b, i: (b * g1 + i, 0, 0)),
        ),
        compiler_params=pltpu.CompilerParams(
            dimension_semantics=("parallel", "parallel"),
            vmem_limit_bytes=budget),
        cost_estimate=cost1,
    )(xv, wk)

    # Finalize batch statistics (tiny per-channel math) and fold the BN affine.
    # NOTE: E[x^2]-E[x]^2 in f32; fine for conv outputs (zero-ish mean), would
    # need a centered second pass if |mean| >> std.
    tot = jnp.sum(part, axis=0)                      # (2, cout_pad) f32
    mean = tot[0, :cout] / m
    var = jnp.maximum(tot[1, :cout] / m - mean * mean, 0.0)   # biased variance
    inv = jax.lax.rsqrt(var + EPS)
    g32 = bn_gamma.astype(jnp.float32)
    b32 = bn_beta.astype(jnp.float32)
    scale = (g32 * inv).reshape(cout, 1)
    shift = (b32 - mean * g32 * inv).reshape(cout, 1)

    tile_hw = _pick_tile_hw(n, hw, cout_pad, budget)
    g2 = hw // tile_hw

    # Pass 2: BN affine + ReLU, writing the transposed (channel-major,
    # un-padded) layout so no XLA transpose/slice/cast pass is needed after.
    out3 = pl.pallas_call(
        _make_bn_relu_kernel(cout),
        out_shape=jax.ShapeDtypeStruct((n, cout, hw), out_dtype),
        grid=(n, g2),
        in_specs=[
            pl.BlockSpec((1, tile_hw, cout_pad), lambda b, i: (b, i, 0)),
            pl.BlockSpec((cout, 1), lambda b, i: (0, 0)),
            pl.BlockSpec((cout, 1), lambda b, i: (0, 0)),
        ],
        out_specs=pl.BlockSpec((1, cout, tile_hw), lambda b, i: (b, 0, i)),
        compiler_params=pltpu.CompilerParams(
            dimension_semantics=("parallel", "parallel"),
            vmem_limit_bytes=budget),
    )(y2d, scale, shift)

    return out3.reshape(n, cout, h, w)               # pure metadata reshape


def _reference(x, w, b, gamma, beta):
    """Pure-JAX f32 reference: Conv2d(3x3,p=1)+bias -> train-mode BN -> ReLU."""
    y = jax.lax.conv_general_dilated(
        x, w, window_strides=(1, 1), padding=((1, 1), (1, 1)),
        dimension_numbers=("NCHW", "OIHW", "NCHW"))
    y = y + b.reshape(1, -1, 1, 1)
    mean = y.mean(axis=(0, 2, 3), keepdims=True)
    var = y.var(axis=(0, 2, 3), keepdims=True)
    yn = (y - mean) * jax.lax.rsqrt(var + EPS)
    yn = yn * gamma.reshape(1, -1, 1, 1) + beta.reshape(1, -1, 1, 1)
    return jnp.maximum(yn, 0.0)


if __name__ == "__main__":
    # Small shapes consistent with the module: batch=2, in_channels=4,
    # out_channels=8, spatial=16; Conv2d kwargs = kernel_size=3, padding=1.
    N, CIN, COUT, H, W = 2, 4, 8, 16, 16

    key = jax.random.PRNGKey(0)
    kx, kwt, kb, kg, kbeta = jax.random.split(key, 5)

    x = jax.random.normal(kx, (N, CIN, H, W), dtype=jnp.float32)
    conv_w = jax.random.normal(kwt, (COUT, CIN, 3, 3), dtype=jnp.float32) * 0.1
    conv_b = jax.random.normal(kb, (COUT,), dtype=jnp.float32) * 0.1
    bn_gamma = 1.0 + 0.1 * jax.random.normal(kg, (COUT,), dtype=jnp.float32)
    bn_beta = 0.1 * jax.random.normal(kbeta, (COUT,), dtype=jnp.float32)

    out = jax.jit(vgg16_conv_block)(x, conv_w, conv_b, bn_gamma, bn_beta)
    jax.block_until_ready(out)
    assert out.shape == (N, COUT, H, W)
    assert bool(jnp.all(jnp.isfinite(out)))

    ref = _reference(x, conv_w, conv_b, bn_gamma, bn_beta)
    assert bool(jnp.allclose(out.astype(jnp.float32), ref, atol=5e-2, rtol=5e-2)), (
        "mismatch vs f32 reference beyond mixed-precision tolerance")
    print("KERNEL_OK")
</pallas_src>

<mosaic_0001>
module attributes {stable_mosaic.version = 11 : i64} {
  func.func @kernel(%arg0: i32, %arg1: i32, %arg2: memref<1x16x18x12xbf16, #tpu.memory_space<vmem>>, %arg3: memref<3x12x128xbf16, #tpu.memory_space<vmem>>, %arg4: memref<1x256x128xbf16, #tpu.memory_space<vmem>>, %arg5: memref<1x2x128xf32, #tpu.memory_space<vmem>>) attributes {dimension_semantics = [#tpu.dimension_semantics<parallel>, #tpu.dimension_semantics<parallel>], iteration_bounds = array<i64: 2, 1>, scalar_prefetch = 0 : i64, scratch_operands = 0 : i64, tpu.core_type = #tpu.core_type<tc>, window_params = [{transform_indices = @transform_0, window_bounds = array<i64: 1, 16, 18, 12>}, {pipeline_mode = #tpu.pipeline_mode<synchronous>, transform_indices = @transform_1, window_bounds = array<i64: 3, 12, 128>}, {transform_indices = @transform_2, window_bounds = array<i64: 1, 256, 128>}, {transform_indices = @transform_3, window_bounds = array<i64: 1, 2, 128>}]} {
    %cst = arith.constant 0.000000e+00 : f32
    %0 = vector.broadcast %cst : f32 to vector<256x128xf32>
    %c0 = arith.constant 0 : index
    %c0_0 = arith.constant 0 : index
    %c0_1 = arith.constant 0 : index
    %c0_2 = arith.constant 0 : index
    %1 = vector.load %arg2[%c0, %c0_0, %c0_1, %c0_2] : memref<1x16x18x12xbf16, #tpu.memory_space<vmem>>, vector<1x16x16x12xbf16>
    %2 = vector.shape_cast %1 : vector<1x16x16x12xbf16> to vector<16x16x12xbf16>
    %3 = vector.shape_cast %2 : vector<16x16x12xbf16> to vector<256x12xbf16>
    %c0_3 = arith.constant 0 : index
    %c0_4 = arith.constant 0 : index
    %c0_5 = arith.constant 0 : index
    %4 = vector.load %arg3[%c0_3, %c0_4, %c0_5] : memref<3x12x128xbf16, #tpu.memory_space<vmem>>, vector<1x12x128xbf16>
    %5 = vector.shape_cast %4 : vector<1x12x128xbf16> to vector<12x128xbf16>
    %cst_6 = arith.constant dense<0.000000e+00> : vector<256x128xf32>
    %6 = tpu.matmul %3, %5, %cst_6 {dimension_numbers = #tpu.dot_dimension_numbers<[1], [0], [0], [1], [0, 0, 1, 1], [], []>} : vector<256x12xbf16>, vector<12x128xbf16>, vector<256x128xf32> -> vector<256x128xf32>
    %7 = arith.addf %0, %6 : vector<256x128xf32>
    %c0_7 = arith.constant 0 : index
    %c0_8 = arith.constant 0 : index
    %c1 = arith.constant 1 : index
    %c0_9 = arith.constant 0 : index
    %8 = vector.load %arg2[%c0_7, %c0_8, %c1, %c0_9] : memref<1x16x18x12xbf16, #tpu.memory_space<vmem>>, vector<1x16x16x12xbf16>
    %9 = vector.shape_cast %8 : vector<1x16x16x12xbf16> to vector<16x16x12xbf16>
    %10 = vector.shape_cast %9 : vector<16x16x12xbf16> to vector<256x12xbf16>
    %c1_10 = arith.constant 1 : index
    %c0_11 = arith.constant 0 : index
    %c0_12 = arith.constant 0 : index
    %11 = vector.load %arg3[%c1_10, %c0_11, %c0_12] : memref<3x12x128xbf16, #tpu.memory_space<vmem>>, vector<1x12x128xbf16>
    %12 = vector.shape_cast %11 : vector<1x12x128xbf16> to vector<12x128xbf16>
    %cst_13 = arith.constant dense<0.000000e+00> : vector<256x128xf32>
    %13 = tpu.matmul %10, %12, %cst_13 {dimension_numbers = #tpu.dot_dimension_numbers<[1], [0], [0], [1], [0, 0, 1, 1], [], []>} : vector<256x12xbf16>, vector<12x128xbf16>, vector<256x128xf32> -> vector<256x128xf32>
    %14 = arith.addf %7, %13 : vector<256x128xf32>
    %c0_14 = arith.constant 0 : index
    %c0_15 = arith.constant 0 : index
    %c2 = arith.constant 2 : index
    %c0_16 = arith.constant 0 : index
    %15 = vector.load %arg2[%c0_14, %c0_15, %c2, %c0_16] : memref<1x16x18x12xbf16, #tpu.memory_space<vmem>>, vector<1x16x16x12xbf16>
    %16 = vector.shape_cast %15 : vector<1x16x16x12xbf16> to vector<16x16x12xbf16>
    %17 = vector.shape_cast %16 : vector<16x16x12xbf16> to vector<256x12xbf16>
    %c2_17 = arith.constant 2 : index
    %c0_18 = arith.constant 0 : index
    %c0_19 = arith.constant 0 : index
    %18 = vector.load %arg3[%c2_17, %c0_18, %c0_19] : memref<3x12x128xbf16, #tpu.memory_space<vmem>>, vector<1x12x128xbf16>
    %19 = vector.shape_cast %18 : vector<1x12x128xbf16> to vector<12x128xbf16>
    %cst_20 = arith.constant dense<0.000000e+00> : vector<256x128xf32>
    %20 = tpu.matmul %17, %19, %cst_20 {dimension_numbers = #tpu.dot_dimension_numbers<[1], [0], [0], [1], [0, 0, 1, 1], [], []>} : vector<256x12xbf16>, vector<12x128xbf16>, vector<256x128xf32> -> vector<256x128xf32>
    %21 = arith.addf %14, %20 : vector<256x128xf32>
    %22 = arith.truncf %21 : vector<256x128xf32> to vector<256x128xbf16>
    %c0_21 = arith.constant 0 : index
    %c0_22 = arith.constant 0 : index
    %c0_23 = arith.constant 0 : index
    %23 = vector.load %arg4[%c0_21, %c0_22, %c0_23] : memref<1x256x128xbf16, #tpu.memory_space<vmem>>, vector<1x256x128xbf16>
    %24 = vector.shape_cast %23 : vector<1x256x128xbf16> to vector<256x128xbf16>
    %25 = vector.shape_cast %22 : vector<256x128xbf16> to vector<1x256x128xbf16>
    tpu.vector_store %arg4[%c0_21, %c0_22, %c0_23], %25 {strides = array<i32>} : memref<1x256x128xbf16, #tpu.memory_space<vmem>>, vector<1x256x128xbf16>,
    %cst_24 = arith.constant dense<0.000000e+00> : vector<128xf32>
    %26 = vector.multi_reduction <add>, %21, %cst_24 [0] : vector<256x128xf32> to vector<128xf32>
    %27 = vector.shape_cast %26 : vector<128xf32> to vector<1x128xf32>
    %c0_25 = arith.constant 0 : index
    %c0_26 = arith.constant 0 : index
    %c0_27 = arith.constant 0 : index
    %28 = vector.load %arg5[%c0_25, %c0_26, %c0_27] : memref<1x2x128xf32, #tpu.memory_space<vmem>>, vector<1x1x128xf32>
    %29 = vector.shape_cast %28 : vector<1x1x128xf32> to vector<1x128xf32>
    %30 = vector.shape_cast %27 : vector<1x128xf32> to vector<1x1x128xf32>
    tpu.vector_store %arg5[%c0_25, %c0_26, %c0_27], %30 {strides = array<i32>} : memref<1x2x128xf32, #tpu.memory_space<vmem>>, vector<1x1x128xf32>,
    %31 = arith.mulf %21, %21 : vector<256x128xf32>
    %cst_28 = arith.constant dense<0.000000e+00> : vector<128xf32>
    %32 = vector.multi_reduction <add>, %31, %cst_28 [0] : vector<256x128xf32> to vector<128xf32>
    %33 = vector.shape_cast %32 : vector<128xf32> to vector<1x128xf32>
    %c0_29 = arith.constant 0 : index
    %c1_30 = arith.constant 1 : index
    %c0_31 = arith.constant 0 : index
    %34 = vector.load %arg5[%c0_29, %c1_30, %c0_31] : memref<1x2x128xf32, #tpu.memory_space<vmem>>, vector<1x1x128xf32>
    %35 = vector.shape_cast %34 : vector<1x1x128xf32> to vector<1x128xf32>
    %36 = vector.shape_cast %33 : vector<1x128xf32> to vector<1x1x128xf32>
    tpu.vector_store %arg5[%c0_29, %c1_30, %c0_31], %36 {strides = array<i32>} : memref<1x2x128xf32, #tpu.memory_space<vmem>>, vector<1x1x128xf32>,
    return
  }
  func.func @transform_0(%arg0: i32, %arg1: i32) -> (i32, i32, i32, i32) {
    %c0_i32 = arith.constant 0 : i32
    %c0_i32_0 = arith.constant 0 : i32
    %c0_i32_1 = arith.constant 0 : i32
    return %arg0, %arg1, %c0_i32, %c0_i32_0 : i32, i32, i32, i32
  }
  func.func @transform_1(%arg0: i32, %arg1: i32) -> (i32, i32, i32) {
    %c0_i32 = arith.constant 0 : i32
    %c0_i32_0 = arith.constant 0 : i32
    %c0_i32_1 = arith.constant 0 : i32
    %c0_i32_2 = arith.constant 0 : i32
    return %c0_i32, %c0_i32_0, %c0_i32_1 : i32, i32, i32
  }
  func.func @transform_2(%arg0: i32, %arg1: i32) -> (i32, i32, i32) {
    %c0_i32 = arith.constant 0 : i32
    %c0_i32_0 = arith.constant 0 : i32
    return %arg0, %arg1, %c0_i32 : i32, i32, i32
  }
  func.func @transform_3(%arg0: i32, %arg1: i32) -> (i32, i32, i32) {
    %c1_i32 = arith.constant 1 : i32
    %0 = arith.muli %arg0, %c1_i32 : i32
    %1 = arith.addi %0, %arg1 : i32
    %c0_i32 = arith.constant 0 : i32
    %c0_i32_0 = arith.constant 0 : i32
    %c0_i32_1 = arith.constant 0 : i32
    return %1, %c0_i32, %c0_i32_0 : i32, i32, i32
  }
}

module attributes {stable_mosaic.version = 11 : i64} {
  func.func @kernel(%arg0: i32, %arg1: i32, %arg2: memref<1x256x128xbf16, #tpu.memory_space<vmem>>, %arg3: memref<8x1xf32, #tpu.memory_space<vmem>>, %arg4: memref<8x1xf32, #tpu.memory_space<vmem>>, %arg5: memref<1x8x256xf32, #tpu.memory_space<vmem>>) attributes {dimension_semantics = [#tpu.dimension_semantics<parallel>, #tpu.dimension_semantics<parallel>], iteration_bounds = array<i64: 2, 1>, scalar_prefetch = 0 : i64, scratch_operands = 0 : i64, tpu.core_type = #tpu.core_type<tc>, window_params = [{transform_indices = @transform_0, window_bounds = array<i64: 1, 256, 128>}, {pipeline_mode = #tpu.pipeline_mode<synchronous>, transform_indices = @transform_1, window_bounds = array<i64: 8, 1>}, {pipeline_mode = #tpu.pipeline_mode<synchronous>, transform_indices = @transform_2, window_bounds = array<i64: 8, 1>}, {transform_indices = @transform_3, window_bounds = array<i64: 1, 8, 256>}]} {
    %c0 = arith.constant 0 : index
    %c0_0 = arith.constant 0 : index
    %c0_1 = arith.constant 0 : index
    %0 = vector.load %arg2[%c0, %c0_0, %c0_1] : memref<1x256x128xbf16, #tpu.memory_space<vmem>>, vector<1x256x128xbf16>
    %1 = vector.shape_cast %0 : vector<1x256x128xbf16> to vector<256x128xbf16>
    %2 = arith.extf %1 : vector<256x128xbf16> to vector<256x128xf32>
    %3 = tpu.transpose %2, [1, 0] : vector<256x128xf32> -> vector<128x256xf32>
    %4 = vector.extract_strided_slice %3 {offsets = [0, 0], sizes = [8, 256], strides = [1, 1]} : vector<128x256xf32> to vector<8x256xf32>
    %c0_2 = arith.constant 0 : index
    %c0_3 = arith.constant 0 : index
    %5 = vector.load %arg3[%c0_2, %c0_3] : memref<8x1xf32, #tpu.memory_space<vmem>>, vector<8x1xf32>
    %6 = vector.broadcast %5 : vector<8x1xf32> to vector<8x256xf32>
    %7 = arith.mulf %4, %6 : vector<8x256xf32>
    %c0_4 = arith.constant 0 : index
    %c0_5 = arith.constant 0 : index
    %8 = vector.load %arg4[%c0_4, %c0_5] : memref<8x1xf32, #tpu.memory_space<vmem>>, vector<8x1xf32>
    %9 = vector.broadcast %8 : vector<8x1xf32> to vector<8x256xf32>
    %10 = arith.addf %7, %9 : vector<8x256xf32>
    %cst = arith.constant 0.000000e+00 : f32
    %11 = vector.broadcast %cst : f32 to vector<8x256xf32>
    %12 = arith.maximumf %10, %11 : vector<8x256xf32>
    %c0_6 = arith.constant 0 : index
    %c0_7 = arith.constant 0 : index
    %c0_8 = arith.constant 0 : index
    %13 = vector.load %arg5[%c0_6, %c0_7, %c0_8] : memref<1x8x256xf32, #tpu.memory_space<vmem>>, vector<1x8x256xf32>
    %14 = vector.shape_cast %13 : vector<1x8x256xf32> to vector<8x256xf32>
    %15 = vector.shape_cast %12 : vector<8x256xf32> to vector<1x8x256xf32>
    tpu.vector_store %arg5[%c0_6, %c0_7, %c0_8], %15 {strides = array<i32>} : memref<1x8x256xf32, #tpu.memory_space<vmem>>, vector<1x8x256xf32>,
    return
  }
  func.func @transform_0(%arg0: i32, %arg1: i32) -> (i32, i32, i32) {
    %c0_i32 = arith.constant 0 : i32
    %c0_i32_0 = arith.constant 0 : i32
    return %arg0, %arg1, %c0_i32 : i32, i32, i32
  }
  func.func @transform_1(%arg0: i32, %arg1: i32) -> (i32, i32) {
    %c0_i32 = arith.constant 0 : i32
    %c0_i32_0 = arith.constant 0 : i32
    %c0_i32_1 = arith.constant 0 : i32
    return %c0_i32, %c0_i32_0 : i32, i32
  }
  func.func @transform_2(%arg0: i32, %arg1: i32) -> (i32, i32) {
    %c0_i32 = arith.constant 0 : i32
    %c0_i32_0 = arith.constant 0 : i32
    %c0_i32_1 = arith.constant 0 : i32
    return %c0_i32, %c0_i32_0 : i32, i32
  }
  func.func @transform_3(%arg0: i32, %arg1: i32) -> (i32, i32, i32) {
    %c0_i32 = arith.constant 0 : i32
    %c0_i32_0 = arith.constant 0 : i32
    return %arg0, %c0_i32, %arg1 : i32, i32, i32
  }
}

</mosaic_0001>

<llo_original>
// kernel: vgg16_conv_block.3
$region0: #{vgg16_conv_block.3}
  #allocation0 [shape = 'u32[]', space=smem, size = 0x4, offset = 0x4, fixed_abs, tag = 'smem constant byte address 0x4 - core index']
  #allocation1 [shape = 'u32[144,128]{1,0:T(1,128)}', space=vmem, size = 0x12000, scoped, tag = 'internal scratch']
  %s0 = inlined_call_operand.vmem [shape: bf16[2,256,128], index: 0, kind: input, shape index: {}]
  %s1 = inlined_call_operand.vmem [shape: f32[8,1], index: 1, kind: input, shape index: {}]
  %s2 = inlined_call_operand.vmem [shape: f32[8,1], index: 2, kind: input, shape index: {}]
  %s3 = inlined_call_operand.vmem [shape: f32[2,8,256], index: 3, kind: output, shape index: {}]
  %s4 = sld [smem:[#allocation0]]
  $region45: #{vgg16_conv_block.3} parent=0
    _
  %s6 = ssub.s32 1, %s4
  %s7 = scalar_select 0, %s6, %s4
  loop: start=0, step=1, limit=4
  $region2: #{vgg16_conv_block.3} parent=0 // loop_pre_header
    _
  $region3: #{vgg16_conv_block.3} parent=0 // loop_header
    %s9 = sphi 0, %s13
    %p10 = scmp.ge.s32.totalorder %s9, 4
    %s16 = sphi 0, %s28
    %s17 = sphi 0, %s24
    %s18 = sphi 0, %s16
    %s19 = sphi 0, %s17
    %s20 = sphi 0, %s18
    %s21 = sphi 0, %s19
    %s33 = sphi 0, %s35
    %s36 = sphi 0, %s33
    %s37 = sphi 0, %s36
    %s53 = sphi 0, %s37
    %s57 = sphi 0, %s57
    %s59 = sphi 0, %s57
    %s60 = sphi 0, %s59
    %s74 = sphi 0, %s60
    %s78 = sphi 0, %s78
    %s80 = sphi 0, %s78
    %s81 = sphi 0, %s80
    %s95 = sphi 0, %s81
    %s103 = sphi 0, %s105
    %s106 = sphi 0, %s103
    %s107 = sphi 0, %s106
    %s123 = sphi 0, %s107
  $region4: #{vgg16_conv_block.3} parent=0 // loop_header_branch
    %12 = sbr.rel (%p10) target = $region8
  $region5: #{vgg16_conv_block.3} parent=0 // loop_body
    %s14 = ssub.s32 %s9, 1
    %s15 = ssub.s32 %s9, 2
    %s22 = sadd.s32 1, %s17
    %p23 = scmp.ge.s32.totalorder %s22, 1
    %s24 = scalar_select %p23, 0, %s22
    %s25 = sadd.s32 1, %s16
    %s26 = scalar_select %p23, %s25, %s16
    %p27 = scmp.ge.s32.totalorder %s26, 2
    %s28 = scalar_select %p27, 0, %s26
    %s29 = ssub.s32 %s16, %s28
    %s30 = ssub.s32 %s17, %s24
    %s31 = sor.u32 %s29, %s30
    %p32 = scmp.eq.s32.totalorder %s31, 0
    %s34 = sadd.s32 %s33, 1
    %s35 = scalar_select %p32, %s33, %s34
    %p38 = pneg %p32
    %p39 = scmp.eq.s32.totalorder %s9, 1
    %p40 = por %p38, %p39
    %p41 = scmp.ne.s32.totalorder %s33, %s36
    %p42 = scmp.eq.s32.totalorder %s9, 0
    %p43 = por %p41, %p42
    %p44 = scmp.ne.s32.totalorder %s33, %s36
    %p45 = scmp.eq.s32.totalorder %s14, 1
    %p46 = por %p44, %p45
    %p47 = scmp.ne.s32.totalorder %s36, %s37
    %p48 = scmp.eq.s32.totalorder %s14, 0
    %p49 = por %p47, %p48
    %p50 = scmp.ne.s32.totalorder %s36, %s37
    %p51 = scmp.eq.s32.totalorder %s15, 1
    %p52 = por %p50, %p51
    %p54 = scmp.ne.s32.totalorder %s37, %s53
    %p55 = scmp.eq.s32.totalorder %s15, 0
    %p56 = por %p54, %p55
    %s58 = sadd.s32 %s57, 1
    %p61 = scmp.eq.s32.totalorder %s9, 1
    %p62 = scmp.ne.s32.totalorder %s57, %s59
    %p63 = scmp.eq.s32.totalorder %s9, 0
    %p64 = por %p62, %p63
    %p65 = scmp.ne.s32.totalorder %s57, %s59
    %p66 = scmp.eq.s32.totalorder %s14, 1
    %p67 = por %p65, %p66
    %p68 = scmp.ne.s32.totalorder %s59, %s60
    %p69 = scmp.eq.s32.totalorder %s14, 0
    %p70 = por %p68, %p69
    %p71 = scmp.ne.s32.totalorder %s59, %s60
    %p72 = scmp.eq.s32.totalorder %s15, 1
    %p73 = por %p71, %p72
    %p75 = scmp.ne.s32.totalorder %s60, %s74
    %p76 = scmp.eq.s32.totalorder %s15, 0
    %p77 = por %p75, %p76
    %s79 = sadd.s32 %s78, 1
    %p82 = scmp.eq.s32.totalorder %s9, 1
    %p83 = scmp.ne.s32.totalorder %s78, %s80
    %p84 = scmp.eq.s32.totalorder %s9, 0
    %p85 = por %p83, %p84
    %p86 = scmp.ne.s32.totalorder %s78, %s80
    %p87 = scmp.eq.s32.totalorder %s14, 1
    %p88 = por %p86, %p87
    %p89 = scmp.ne.s32.totalorder %s80, %s81
    %p90 = scmp.eq.s32.totalorder %s14, 0
    %p91 = por %p89, %p90
    %p92 = scmp.ne.s32.totalorder %s80, %s81
    %p93 = scmp.eq.s32.totalorder %s15, 1
    %p94 = por %p92, %p93
    %p96 = scmp.ne.s32.totalorder %s81, %s95
    %p97 = scmp.eq.s32.totalorder %s15, 0
    %p98 = por %p96, %p97
    %s99 = ssub.s32 %s16, %s28
    %s100 = ssub.s32 %s17, %s24
    %s101 = sor.u32 %s99, %s100
    %p102 = scmp.eq.s32.totalorder %s101, 0
    %s104 = sadd.s32 %s103, 1
    %s105 = scalar_select %p102, %s103, %s104
    %p108 = pneg %p102
    %p109 = scmp.eq.s32.totalorder %s9, 1
    %p110 = por %p108, %p109
    %p111 = scmp.ne.s32.totalorder %s103, %s106
    %p112 = scmp.eq.s32.totalorder %s9, 0
    %p113 = por %p111, %p112
    %p114 = scmp.ne.s32.totalorder %s103, %s106
    %p115 = scmp.eq.s32.totalorder %s14, 1
    %p116 = por %p114, %p115
    %p117 = scmp.ne.s32.totalorder %s106, %s107
    %p118 = scmp.eq.s32.totalorder %s14, 0
    %p119 = por %p117, %p118
    %p120 = scmp.ne.s32.totalorder %s106, %s107
    %p121 = scmp.eq.s32.totalorder %s15, 1
    %p122 = por %p120, %p121
    %p124 = scmp.ne.s32.totalorder %s107, %s123
    %p125 = scmp.eq.s32.totalorder %s15, 0
    %p126 = por %p124, %p125
    %p127 = scmp.le.s32.totalorder 1, %s9
    %p128 = scmp.lt.s32.totalorder %s9, 3
    %p129 = pnand %p127, %p128
    %p130 = pneg %p129
    // Predicated region
    $region9: #{vgg16_conv_block.3} parent=5 // pred_check
      _
    $region10: #{vgg16_conv_block.3} parent=5 // pred_check_branch
      %132 = sbr.rel (%p129) target = $region12
    $region11: #{vgg16_conv_block.3} parent=5 // pred_region
      %s133 = ssub.s32 %s9, 1
      // Predicated region
      $region13: #{vgg16_conv_block.3} parent=11 // pred_check
        %p134 = pneg %p70
      $region14: #{vgg16_conv_block.3} parent=11 // pred_check_branch
        %136 = sbr.rel (%p134) target = $region16
      $region15: #{vgg16_conv_block.3} parent=11 // pred_region
        _
      $region16: #{vgg16_conv_block.3} parent=11 // pred_fallthru
        _
      // Predicated region
      $region17: #{vgg16_conv_block.3} parent=11 // pred_check
        %p137 = pneg %p91
      $region18: #{vgg16_conv_block.3} parent=11 // pred_check_branch
        %139 = sbr.rel (%p137) target = $region20
      $region19: #{vgg16_conv_block.3} parent=11 // pred_region
        _
      $region20: #{vgg16_conv_block.3} parent=11 // pred_fallthru
        _
    $region12: #{vgg16_conv_block.3} parent=5 // pred_fallthru
      _
    %p140 = scmp.lt.s32.totalorder %s9, 2
    // Predicated region
    $region21: #{vgg16_conv_block.3} parent=5 // pred_check
      %p141 = pneg %p140
    $region22: #{vgg16_conv_block.3} parent=5 // pred_check_branch
      %143 = sbr.rel (%p141) target = $region24
    $region23: #{vgg16_conv_block.3} parent=5 // pred_region
      // Predicated region
      $region25: #{vgg16_conv_block.3} parent=23 // pred_check
        %p144 = pneg %p43
      $region26: #{vgg16_conv_block.3} parent=23 // pred_check_branch
        %146 = sbr.rel (%p144) target = $region28
      $region27: #{vgg16_conv_block.3} parent=23 // pred_region
        %s147 = smul.u32 32, %s17
        %p148 = scmp.lt.s32.totalorder %s16, 1
        %s149 = scalar_select %p148, %s16, 1
        %p150 = scmp.lt.s32.totalorder %s147, 31
        %s151 = scalar_select %p150, %s147, 31
        %s152 = smul.addr %s149, 32
        %s153 = sadd.s32 %s151, %s152
        %s154 = smul.addr %s153, 4
        %s155 = scalar_lea.vmem %s0, %s154
        %s156 = smul.u32 32, %s17
      $region28: #{vgg16_conv_block.3} parent=23 // pred_fallthru
        _
    $region24: #{vgg16_conv_block.3} parent=5 // pred_fallthru
      _
    %p157 = scmp.le.s32.totalorder 1, %s9
    %p158 = scmp.lt.s32.totalorder %s9, 3
    %p159 = pnand %p157, %p158
    %p160 = pneg %p159
    // Predicated region
    $region29: #{vgg16_conv_block.3} parent=5 // pred_check
      _
    $region30: #{vgg16_conv_block.3} parent=5 // pred_check_branch
      %162 = sbr.rel (%p159) target = $region32
    $region31: #{vgg16_conv_block.3} parent=5 // pred_region
      %s163 = ssub.s32 %s9, 1
      %s164 = smul.u32 32, %s19
      %p165 = scmp.lt.s32.totalorder %s18, 1
      %s166 = scalar_select %p165, %s18, 1
      %p167 = scmp.lt.s32.totalorder %s164, 31
      %s168 = scalar_select %p167, %s164, 31
      %s169 = smul.addr %s166, 32
      %s170 = sadd.s32 %s168, %s169
      %s171 = smul.addr %s170, 4
      %s172 = scalar_lea.vmem %s0, %s171
      %p173 = pneg %p49
      %p174 = pneg %p46
      %p175 = pneg %p70
      %p176 = pneg %p67
      %p177 = pneg %p91
      %p178 = pneg %p88
      %p179 = pneg %p119
      %p180 = pneg %p116
      %s181 = smul.u32 2, %s19
      %p182 = scmp.lt.s32.totalorder %s18, 1
      %s183 = scalar_select %p182, %s18, 1
      %p184 = scmp.lt.s32.totalorder %s181, 1
      %s185 = scalar_select %p184, %s181, 1
      %s186 = smul.addr %s183, 2
      %s187 = sadd.s32 %s185, %s186
      %s188 = smul.addr %s187, 8
      %s189 = scalar_lea.vmem %s3, %s188
      %s190 = smul.u32 32, %s19
      %p191 = scmp.lt.s32.totalorder %s18, 1
      %s192 = scalar_select %p191, %s18, 1
      %p193 = scmp.lt.s32.totalorder %s190, 31
      %s194 = scalar_select %p193, %s190, 31
      %s195 = smul.addr %s192, 32
      %s196 = sadd.s32 %s194, %s195
      %s197 = smul.addr %s196, 4
      %s198 = scalar_lea.vmem %s0, %s197
      %s199 = smul.u32 32, %s19
      %s200 = smul.u32 2, %s19
      %p201 = scmp.lt.s32.totalorder %s18, 1
      %s202 = scalar_select %p201, %s18, 1
      %p203 = scmp.lt.s32.totalorder %s200, 1
      %s204 = scalar_select %p203, %s200, 1
      %s205 = smul.addr %s202, 2
      %s206 = sadd.s32 %s204, %s205
      %s207 = smul.addr %s206, 8
      %s208 = scalar_lea.vmem %s3, %s207
      %s209 = smul.u32 2, %s19
      %v210 = vld [vmem:[%s198] sm:$0xf]
      %v211 = vld [vmem:[%s198 + $0x4] sm:$0xf]
      %v212 = vld [vmem:[%s198 + $0x8] sm:$0xf]
      %v213 = vld [vmem:[%s198 + $0xc] sm:$0xf]
      %v214 = vld [vmem:[%s198 + $0x10] sm:$0xf]
      %v215 = vld [vmem:[%s198 + $0x14] sm:$0xf]
      %v216 = vld [vmem:[%s198 + $0x18] sm:$0xf]
      %v217 = vld [vmem:[%s198 + $0x1c] sm:$0xf]
      %v218 = vld [vmem:[%s198 + $0x20] sm:$0xf]
      %v219 = vld [vmem:[%s198 + $0x24] sm:$0xf]
      %v220 = vld [vmem:[%s198 + $0x28] sm:$0xf]
      %v221 = vld [vmem:[%s198 + $0x2c] sm:$0xf]
      %v222 = vld [vmem:[%s198 + $0x30] sm:$0xf]
      %v223 = vld [vmem:[%s198 + $0x34] sm:$0xf]
      %v224 = vld [vmem:[%s198 + $0x38] sm:$0xf]
      %v225 = vld [vmem:[%s198 + $0x3c] sm:$0xf]
      %v226 = vld [vmem:[%s198 + $0x40] sm:$0xf]
      %v227 = vld [vmem:[%s198 + $0x44] sm:$0xf]
      %v228 = vld [vmem:[%s198 + $0x48] sm:$0xf]
      %v229 = vld [vmem:[%s198 + $0x4c] sm:$0xf]
      %v230 = vld [vmem:[%s198 + $0x50] sm:$0xf]
      %v231 = vld [vmem:[%s198 + $0x54] sm:$0xf]
      %v232 = vld [vmem:[%s198 + $0x58] sm:$0xf]
      %v233 = vld [vmem:[%s198 + $0x5c] sm:$0xf]
      %v234 = vld [vmem:[%s198 + $0x60] sm:$0xf]
      %v235 = vld [vmem:[%s198 + $0x64] sm:$0xf]
      %v236 = vld [vmem:[%s198 + $0x68] sm:$0xf]
      %v237 = vld [vmem:[%s198 + $0x6c] sm:$0xf]
      %v238 = vld [vmem:[%s198 + $0x70] sm:$0xf]
      %v239 = vld [vmem:[%s198 + $0x74] sm:$0xf]
      %v240 = vld [vmem:[%s198 + $0x78] sm:$0xf]
      %v241 = vld [vmem:[%s198 + $0x7c] sm:$0xf]
      %v242 = vunpack.c.l.bf16 %v210
      %v243 = vunpack.c.l.bf16 %v211
      %v244 = vunpack.c.l.bf16 %v212
      %v245 = vunpack.c.l.bf16 %v213
      %v246 = vunpack.c.l.bf16 %v214
      %v247 = vunpack.c.l.bf16 %v215
      %v248 = vunpack.c.l.bf16 %v216
      %v249 = vunpack.c.l.bf16 %v217
      %v250 = vunpack.c.l.bf16 %v218
      %v251 = vunpack.c.l.bf16 %v219
      %v252 = vunpack.c.l.bf16 %v220
      %v253 = vunpack.c.l.bf16 %v221
      %v254 = vunpack.c.l.bf16 %v222
      %v255 = vunpack.c.l.bf16 %v223
      %v256 = vunpack.c.l.bf16 %v224
      %v257 = vunpack.c.l.bf16 %v225
      %v258 = vunpack.c.l.bf16 %v226
      %v259 = vunpack.c.l.bf16 %v227
      %v260 = vunpack.c.l.bf16 %v228
      %v261 = vunpack.c.l.bf16 %v229
      %v262 = vunpack.c.l.bf16 %v230
      %v263 = vunpack.c.l.bf16 %v231
      %v264 = vunpack.c.l.bf16 %v232
      %v265 = vunpack.c.l.bf16 %v233
      %v266 = vunpack.c.l.bf16 %v234
      %v267 = vunpack.c.l.bf16 %v235
      %v268 = vunpack.c.l.bf16 %v236
      %v269 = vunpack.c.l.bf16 %v237
      %v270 = vunpack.c.l.bf16 %v238
      %v271 = vunpack.c.l.bf16 %v239
      %v272 = vunpack.c.l.bf16 %v240
      %v273 = vunpack.c.l.bf16 %v241
      %274 = vxpose.xlu0.b32.start [1/16] %v242, 128
      %275 = vxpose.xlu0.b32.cont [2/16] %v243, 128
      %276 = vxpose.xlu0.b32.cont [3/16] %v244, 128
      %277 = vxpose.xlu0.b32.cont [4/16] %v245, 128
      %278 = vxpose.xlu0.b32.cont [5/16] %v246, 128
      %279 = vxpose.xlu0.b32.cont [6/16] %v247, 128
      %280 = vxpose.xlu0.b32.cont [7/16] %v248, 128
      %281 = vxpose.xlu0.b32.cont [8/16] %v249, 128
      %282 = vxpose.xlu0.b32.cont [9/16] %v250, 128
      %283 = vxpose.xlu0.b32.cont [10/16] %v251, 128
      %284 = vxpose.xlu0.b32.cont [11/16] %v252, 128
      %285 = vxpose.xlu0.b32.cont [12/16] %v253, 128
      %286 = vxpose.xlu0.b32.cont [13/16] %v254, 128
      %287 = vxpose.xlu0.b32.cont [14/16] %v255, 128
      %288 = vxpose.xlu0.b32.cont [15/16] %v256, 128
      %289 = vxpose.xlu0.b32.end [16/16] %v257, 128
      %v290 = vpop.trf.xlu0
      %v291 = vpop.trf.xlu0
      %v292 = vpop.trf.xlu0
      %v293 = vpop.trf.xlu0
      %v294 = vpop.trf.xlu0
      %v295 = vpop.trf.xlu0
      %v296 = vpop.trf.xlu0
      %v297 = vpop.trf.xlu0
      %v298 = vpop.trf.xlu0
      %v299 = vpop.trf.xlu0
      %v300 = vpop.trf.xlu0
      %v301 = vpop.trf.xlu0
      %v302 = vpop.trf.xlu0
      %v303 = vpop.trf.xlu0
      %v304 = vpop.trf.xlu0
      %v305 = vpop.trf.xlu0
      %306 = vxpose.xlu0.b32.start [1/16] %v258, 128
      %307 = vxpose.xlu0.b32.cont [2/16] %v259, 128
      %308 = vxpose.xlu0.b32.cont [3/16] %v260, 128
      %309 = vxpose.xlu0.b32.cont [4/16] %v261, 128
      %310 = vxpose.xlu0.b32.cont [5/16] %v262, 128
      %311 = vxpose.xlu0.b32.cont [6/16] %v263, 128
      %312 = vxpose.xlu0.b32.cont [7/16] %v264, 128
      %313 = vxpose.xlu0.b32.cont [8/16] %v265, 128
      %314 = vxpose.xlu0.b32.cont [9/16] %v266, 128
      %315 = vxpose.xlu0.b32.cont [10/16] %v267, 128
      %316 = vxpose.xlu0.b32.cont [11/16] %v268, 128
      %317 = vxpose.xlu0.b32.cont [12/16] %v269, 128
      %318 = vxpose.xlu0.b32.cont [13/16] %v270, 128
      %319 = vxpose.xlu0.b32.cont [14/16] %v271, 128
      %320 = vxpose.xlu0.b32.cont [15/16] %v272, 128
      %321 = vxpose.xlu0.b32.end [16/16] %v273, 128
      %v322 = vpop.trf.xlu0
      %v323 = vpop.trf.xlu0
      %v324 = vpop.trf.xlu0
      %v325 = vpop.trf.xlu0
      %v326 = vpop.trf.xlu0
      %v327 = vpop.trf.xlu0
      %v328 = vpop.trf.xlu0
      %v329 = vpop.trf.xlu0
      %v330 = vpop.trf.xlu0
      %v331 = vpop.trf.xlu0
      %v332 = vpop.trf.xlu0
      %v333 = vpop.trf.xlu0
      %v334 = vpop.trf.xlu0
      %v335 = vpop.trf.xlu0
      %v336 = vpop.trf.xlu0
      %v337 = vpop.trf.xlu0
      %v338 = vld [vmem:[%s1] sm:$0xff]
      %340 = vset.pattern.permute.xlu0 0
      %341 = vperm.xlu0 %340, %v338
      %v342 = vpop.permute.xlu0 %341
      %v344 = vmul.f32 %v290, %v342
      %v345 = vmul.f32 %v322, %v342
      %v346 = vld [vmem:[%s2] sm:$0xff]
      %348 = vset.pattern.permute.xlu0 0
      %349 = vperm.xlu0 %348, %v346
      %v350 = vpop.permute.xlu0 %349
      %v352 = vadd.f32 %v344, %v350
      %v353 = vadd.f32 %v345, %v350
      %v354 = vmax.f32 %v352, 0.0
      %v355 = vmax.f32 %v353, 0.0
      %356 = vst [vmem:[%s208] sm:$0xff] %v354
      %357 = vst [vmem:[%s208 + $0x8] sm:$0xff] %v355
      %s358 = smul.u32 2, %s19
      %p359 = scmp.lt.s32.totalorder %s18, 1
      %s360 = scalar_select %p359, %s18, 1
      %p361 = scmp.lt.s32.totalorder %s358, 1
      %s362 = scalar_select %p361, %s358, 1
      %s363 = smul.addr %s360, 2
      %s364 = sadd.s32 %s362, %s363
      %s365 = smul.addr %s364, 8
      %s366 = scalar_lea.vmem %s3, %s365
      // Predicated region
      $region33: #{vgg16_conv_block.3} parent=31 // pred_check
        %p367 = pneg %p116
      $region34: #{vgg16_conv_block.3} parent=31 // pred_check_branch
        %369 = sbr.rel (%p367) target = $region36
      $region35: #{vgg16_conv_block.3} parent=31 // pred_region
        %s370 = smul.u32 2, %s19
      $region36: #{vgg16_conv_block.3} parent=31 // pred_fallthru
        _
    $region32: #{vgg16_conv_block.3} parent=5 // pred_fallthru
      _
    %p371 = scmp.le.s32.totalorder 2, %s9
    // Predicated region
    $region37: #{vgg16_conv_block.3} parent=5 // pred_check
      %p372 = pneg %p371
    $region38: #{vgg16_conv_block.3} parent=5 // pred_check_branch
      %374 = sbr.rel (%p372) target = $region40
    $region39: #{vgg16_conv_block.3} parent=5 // pred_region
      %s375 = ssub.s32 %s9, 2
      // Predicated region
      $region41: #{vgg16_conv_block.3} parent=39 // pred_check
        %p376 = pneg %p122
      $region42: #{vgg16_conv_block.3} parent=39 // pred_check_branch
        %378 = sbr.rel (%p376) target = $region44
      $region43: #{vgg16_conv_block.3} parent=39 // pred_region
        %s379 = smul.u32 2, %s21
        %p380 = scmp.lt.s32.totalorder %s20, 1
        %s381 = scalar_select %p380, %s20, 1
        %p382 = scmp.lt.s32.totalorder %s379, 1
        %s383 = scalar_select %p382, %s379, 1
        %s384 = smul.addr %s381, 2
        %s385 = sadd.s32 %s383, %s384
        %s386 = smul.addr %s385, 8
        %s387 = scalar_lea.vmem %s3, %s386
      $region44: #{vgg16_conv_block.3} parent=39 // pred_fallthru
        _
    $region40: #{vgg16_conv_block.3} parent=5 // pred_fallthru
      _
  $region6: #{vgg16_conv_block.3} parent=0 // loop_footer
    %s13 = sadd.s32 1, %s9
  $region7: #{vgg16_conv_block.3} parent=0 // loop_footer_branch
    %8 = sbr.rel target = $region3
  $region8: #{vgg16_conv_block.3} parent=0 // loop_exit
    _

// kernel: vgg16_conv_block.2
$region0: #{vgg16_conv_block.2}
  #allocation0 [shape = 'u32[]', space=smem, size = 0x4, offset = 0x4, fixed_abs, tag = 'smem constant byte address 0x4 - core index']
  #allocation1 [shape = 'u32[144,128]{1,0:T(1,128)}', space=vmem, size = 0x12000, scoped, tag = 'internal scratch']
  %s0 = inlined_call_operand.vmem [shape: bf16[2,16,18,12], index: 0, kind: input, shape index: {}]
  %s1 = inlined_call_operand.vmem [shape: bf16[3,12,128], index: 1, kind: input, shape index: {}]
  %s2 = inlined_call_operand.vmem [shape: bf16[2,256,128], index: 2, kind: output, shape index: {0}]
  %s3 = inlined_call_operand.vmem [shape: f32[2,2,128], index: 3, kind: output, shape index: {1}]
  %4 = xla_tuple %s2, %s3
  %s5 = sld [smem:[#allocation0]]
  $region49: #{vgg16_conv_block.2} parent=0
    _
  %s7 = ssub.s32 1, %s5
  %s8 = scalar_select 0, %s7, %s5
  loop: start=0, step=1, limit=4
  $region2: #{vgg16_conv_block.2} parent=0 // loop_pre_header
    _
  $region3: #{vgg16_conv_block.2} parent=0 // loop_header
    %s10 = sphi 0, %s14
    %p11 = scmp.ge.s32.totalorder %s10, 4
    %s17 = sphi 0, %s29
    %s18 = sphi 0, %s25
    %s19 = sphi 0, %s17
    %s20 = sphi 0, %s18
    %s21 = sphi 0, %s19
    %s22 = sphi 0, %s20
    %s34 = sphi 0, %s36
    %s37 = sphi 0, %s34
    %s38 = sphi 0, %s37
    %s54 = sphi 0, %s38
    %s58 = sphi 0, %s58
    %s60 = sphi 0, %s58
    %s61 = sphi 0, %s60
    %s75 = sphi 0, %s61
    %s83 = sphi 0, %s85
    %s86 = sphi 0, %s83
    %s87 = sphi 0, %s86
    %s103 = sphi 0, %s87
    %s111 = sphi 0, %s113
    %s114 = sphi 0, %s111
    %s115 = sphi 0, %s114
    %s131 = sphi 0, %s115
  $region4: #{vgg16_conv_block.2} parent=0 // loop_header_branch
    %13 = sbr.rel (%p11) target = $region8
  $region5: #{vgg16_conv_block.2} parent=0 // loop_body
    %s15 = ssub.s32 %s10, 1
    %s16 = ssub.s32 %s10, 2
    %s23 = sadd.s32 1, %s18
    %p24 = scmp.ge.s32.totalorder %s23, 1
    %s25 = scalar_select %p24, 0, %s23
    %s26 = sadd.s32 1, %s17
    %s27 = scalar_select %p24, %s26, %s17
    %p28 = scmp.ge.s32.totalorder %s27, 2
    %s29 = scalar_select %p28, 0, %s27
    %s30 = ssub.s32 %s17, %s29
    %s31 = ssub.s32 %s18, %s25
    %s32 = sor.u32 %s30, %s31
    %p33 = scmp.eq.s32.totalorder %s32, 0
    %s35 = sadd.s32 %s34, 1
    %s36 = scalar_select %p33, %s34, %s35
    %p39 = pneg %p33
    %p40 = scmp.eq.s32.totalorder %s10, 1
    %p41 = por %p39, %p40
    %p42 = scmp.ne.s32.totalorder %s34, %s37
    %p43 = scmp.eq.s32.totalorder %s10, 0
    %p44 = por %p42, %p43
    %p45 = scmp.ne.s32.totalorder %s34, %s37
    %p46 = scmp.eq.s32.totalorder %s15, 1
    %p47 = por %p45, %p46
    %p48 = scmp.ne.s32.totalorder %s37, %s38
    %p49 = scmp.eq.s32.totalorder %s15, 0
    %p50 = por %p48, %p49
    %p51 = scmp.ne.s32.totalorder %s37, %s38
    %p52 = scmp.eq.s32.totalorder %s16, 1
    %p53 = por %p51, %p52
    %p55 = scmp.ne.s32.totalorder %s38, %s54
    %p56 = scmp.eq.s32.totalorder %s16, 0
    %p57 = por %p55, %p56
    %s59 = sadd.s32 %s58, 1
    %p62 = scmp.eq.s32.totalorder %s10, 1
    %p63 = scmp.ne.s32.totalorder %s58, %s60
    %p64 = scmp.eq.s32.totalorder %s10, 0
    %p65 = por %p63, %p64
    %p66 = scmp.ne.s32.totalorder %s58, %s60
    %p67 = scmp.eq.s32.totalorder %s15, 1
    %p68 = por %p66, %p67
    %p69 = scmp.ne.s32.totalorder %s60, %s61
    %p70 = scmp.eq.s32.totalorder %s15, 0
    %p71 = por %p69, %p70
    %p72 = scmp.ne.s32.totalorder %s60, %s61
    %p73 = scmp.eq.s32.totalorder %s16, 1
    %p74 = por %p72, %p73
    %p76 = scmp.ne.s32.totalorder %s61, %s75
    %p77 = scmp.eq.s32.totalorder %s16, 0
    %p78 = por %p76, %p77
    %s79 = ssub.s32 %s17, %s29
    %s80 = ssub.s32 %s18, %s25
    %s81 = sor.u32 %s79, %s80
    %p82 = scmp.eq.s32.totalorder %s81, 0
    %s84 = sadd.s32 %s83, 1
    %s85 = scalar_select %p82, %s83, %s84
    %p88 = pneg %p82
    %p89 = scmp.eq.s32.totalorder %s10, 1
    %p90 = por %p88, %p89
    %p91 = scmp.ne.s32.totalorder %s83, %s86
    %p92 = scmp.eq.s32.totalorder %s10, 0
    %p93 = por %p91, %p92
    %p94 = scmp.ne.s32.totalorder %s83, %s86
    %p95 = scmp.eq.s32.totalorder %s15, 1
    %p96 = por %p94, %p95
    %p97 = scmp.ne.s32.totalorder %s86, %s87
    %p98 = scmp.eq.s32.totalorder %s15, 0
    %p99 = por %p97, %p98
    %p100 = scmp.ne.s32.totalorder %s86, %s87
    %p101 = scmp.eq.s32.totalorder %s16, 1
    %p102 = por %p100, %p101
    %p104 = scmp.ne.s32.totalorder %s87, %s103
    %p105 = scmp.eq.s32.totalorder %s16, 0
    %p106 = por %p104, %p105
    %s107 = sadd.s32 %s17, %s18
    %s108 = sadd.s32 %s29, %s25
    %s109 = ssub.s32 %s107, %s108
    %p110 = scmp.eq.s32.totalorder %s109, 0
    %s112 = sadd.s32 %s111, 1
    %s113 = scalar_select %p110, %s111, %s112
    %p116 = pneg %p110
    %p117 = scmp.eq.s32.totalorder %s10, 1
    %p118 = por %p116, %p117
    %p119 = scmp.ne.s32.totalorder %s111, %s114
    %p120 = scmp.eq.s32.totalorder %s10, 0
    %p121 = por %p119, %p120
    %p122 = scmp.ne.s32.totalorder %s111, %s114
    %p123 = scmp.eq.s32.totalorder %s15, 1
    %p124 = por %p122, %p123
    %p125 = scmp.ne.s32.totalorder %s114, %s115
    %p126 = scmp.eq.s32.totalorder %s15, 0
    %p127 = por %p125, %p126
    %p128 = scmp.ne.s32.totalorder %s114, %s115
    %p129 = scmp.eq.s32.totalorder %s16, 1
    %p130 = por %p128, %p129
    %p132 = scmp.ne.s32.totalorder %s115, %s131
    %p133 = scmp.eq.s32.totalorder %s16, 0
    %p134 = por %p132, %p133
    %p135 = scmp.le.s32.totalorder 1, %s10
    %p136 = scmp.lt.s32.totalorder %s10, 3
    %p137 = pnand %p135, %p136
    %p138 = pneg %p137
    // Predicated region
    $region9: #{vgg16_conv_block.2} parent=5 // pred_check
      _
    $region10: #{vgg16_conv_block.2} parent=5 // pred_check_branch
      %140 = sbr.rel (%p137) target = $region12
    $region11: #{vgg16_conv_block.2} parent=5 // pred_region
      %s141 = ssub.s32 %s10, 1
      // Predicated region
      $region13: #{vgg16_conv_block.2} parent=11 // pred_check
        %p142 = pneg %p71
      $region14: #{vgg16_conv_block.2} parent=11 // pred_check_branch
        %144 = sbr.rel (%p142) target = $region16
      $region15: #{vgg16_conv_block.2} parent=11 // pred_region
        _
      $region16: #{vgg16_conv_block.2} parent=11 // pred_fallthru
        _
    $region12: #{vgg16_conv_block.2} parent=5 // pred_fallthru
      _
    %p145 = scmp.lt.s32.totalorder %s10, 2
    // Predicated region
    $region17: #{vgg16_conv_block.2} parent=5 // pred_check
      %p146 = pneg %p145
    $region18: #{vgg16_conv_block.2} parent=5 // pred_check_branch
      %148 = sbr.rel (%p146) target = $region20
    $region19: #{vgg16_conv_block.2} parent=5 // pred_region
      // Predicated region
      $region21: #{vgg16_conv_block.2} parent=19 // pred_check
        %p149 = pneg %p44
      $region22: #{vgg16_conv_block.2} parent=19 // pred_check_branch
        %151 = sbr.rel (%p149) target = $region24
      $region23: #{vgg16_conv_block.2} parent=19 // pred_region
        %s152 = smul.u32 16, %s18
        %p153 = scmp.lt.s32.totalorder %s17, 1
        %s154 = scalar_select %p153, %s17, 1
        %p155 = scmp.lt.s32.totalorder %s152, 15
        %s156 = scalar_select %p155, %s152, 15
        %s157 = smul.addr %s156, 3
        %s158 = smul.addr %s154, 48
        %s159 = sadd.s32 %s157, %s158
        %s160 = smul.addr %s159, 4
        %s161 = scalar_lea.vmem %s0, %s160
        %s162 = smul.u32 16, %s18
      $region24: #{vgg16_conv_block.2} parent=19 // pred_fallthru
        _
    $region20: #{vgg16_conv_block.2} parent=5 // pred_fallthru
      _
    %p163 = scmp.le.s32.totalorder 1, %s10
    %p164 = scmp.lt.s32.totalorder %s10, 3
    %p165 = pnand %p163, %p164
    %p166 = pneg %p165
    // Predicated region
    $region25: #{vgg16_conv_block.2} parent=5 // pred_check
      _
    $region26: #{vgg16_conv_block.2} parent=5 // pred_check_branch
      %168 = sbr.rel (%p165) target = $region28
    $region27: #{vgg16_conv_block.2} parent=5 // pred_region
      %s169 = ssub.s32 %s10, 1
      %s170 = smul.u32 16, %s20
      %p171 = scmp.lt.s32.totalorder %s19, 1
      %s172 = scalar_select %p171, %s19, 1
      %p173 = scmp.lt.s32.totalorder %s170, 15
      %s174 = scalar_select %p173, %s170, 15
      %s175 = smul.addr %s174, 3
      %s176 = smul.addr %s172, 48
      %s177 = sadd.s32 %s175, %s176
      %s178 = smul.addr %s177, 4
      %s179 = scalar_lea.vmem %s0, %s178
      %p180 = pneg %p50
      %p181 = pneg %p47
      %p182 = pneg %p71
      %p183 = pneg %p68
      %p184 = pneg %p99
      %p185 = pneg %p96
      %s186 = smul.u32 32, %s20
      %p187 = scmp.lt.s32.totalorder %s19, 1
      %s188 = scalar_select %p187, %s19, 1
      %p189 = scmp.lt.s32.totalorder %s186, 31
      %s190 = scalar_select %p189, %s186, 31
      %s191 = smul.addr %s188, 32
      %s192 = sadd.s32 %s190, %s191
      %s193 = smul.addr %s192, 4
      %s194 = scalar_lea.vmem %s2, %s193
      %p195 = pneg %p127
      %p196 = pneg %p124
      %s197 = sadd.s32 %s19, %s20
      %p198 = scmp.lt.s32.totalorder %s197, 1
      %s199 = scalar_select %p198, %s197, 1
      %s200 = smul.addr %s199, 2
      %s201 = scalar_lea.vmem %s3, %s200
      %s202 = smul.u32 16, %s20
      %p203 = scmp.lt.s32.totalorder %s19, 1
      %s204 = scalar_select %p203, %s19, 1
      %p205 = scmp.lt.s32.totalorder %s202, 15
      %s206 = scalar_select %p205, %s202, 15
      %s207 = smul.addr %s206, 3
      %s208 = smul.addr %s204, 48
      %s209 = sadd.s32 %s207, %s208
      %s210 = smul.addr %s209, 4
      %s211 = scalar_lea.vmem %s0, %s210
      %s212 = smul.u32 16, %s20
      %s213 = smul.u32 32, %s20
      %p214 = scmp.lt.s32.totalorder %s19, 1
      %s215 = scalar_select %p214, %s19, 1
      %p216 = scmp.lt.s32.totalorder %s213, 31
      %s217 = scalar_select %p216, %s213, 31
      %s218 = smul.addr %s215, 32
      %s219 = sadd.s32 %s217, %s218
      %s220 = smul.addr %s219, 4
      %s221 = scalar_lea.vmem %s2, %s220
      %s222 = smul.u32 32, %s20
      %s223 = sadd.s32 %s19, %s20
      %p224 = scmp.lt.s32.totalorder %s223, 1
      %s225 = scalar_select %p224, %s223, 1
      %s226 = smul.addr %s225, 2
      %s227 = scalar_lea.vmem %s3, %s226
      %s228 = sadd.s32 %s19, %s20
      %v230 = vld [vmem:[%s211] sm:$0xf]
      %v231 = vld [vmem:[%s211 + $0x4] sm:$0xf]
      %v232 = vld [vmem:[%s211 + $0xc] sm:$0xf]
      %v233 = vld [vmem:[%s211 + $0x10] sm:$0xf]
      %v234 = vld [vmem:[%s211 + $0x18] sm:$0xf]
      %v235 = vld [vmem:[%s211 + $0x1c] sm:$0xf]
      %v236 = vld [vmem:[%s211 + $0x24] sm:$0xf]
      %v237 = vld [vmem:[%s211 + $0x28] sm:$0xf]
      %v238 = vld [vmem:[%s211 + $0x30] sm:$0xf]
      %v239 = vld [vmem:[%s211 + $0x34] sm:$0xf]
      %v240 = vld [vmem:[%s211 + $0x3c] sm:$0xf]
      %v241 = vld [vmem:[%s211 + $0x40] sm:$0xf]
      %v242 = vld [vmem:[%s211 + $0x48] sm:$0xf]
      %v243 = vld [vmem:[%s211 + $0x4c] sm:$0xf]
      %v244 = vld [vmem:[%s211 + $0x54] sm:$0xf]
      %v245 = vld [vmem:[%s211 + $0x58] sm:$0xf]
      %v246 = vld [vmem:[%s211 + $0x60] sm:$0xf]
      %v247 = vld [vmem:[%s211 + $0x64] sm:$0xf]
      %v248 = vld [vmem:[%s211 + $0x6c] sm:$0xf]
      %v249 = vld [vmem:[%s211 + $0x70] sm:$0xf]
      %v250 = vld [vmem:[%s211 + $0x78] sm:$0xf]
      %v251 = vld [vmem:[%s211 + $0x7c] sm:$0xf]
      %v252 = vld [vmem:[%s211 + $0x84] sm:$0xf]
      %v253 = vld [vmem:[%s211 + $0x88] sm:$0xf]
      %v254 = vld [vmem:[%s211 + $0x90] sm:$0xf]
      %v255 = vld [vmem:[%s211 + $0x94] sm:$0xf]
      %v256 = vld [vmem:[%s211 + $0x9c] sm:$0xf]
      %v257 = vld [vmem:[%s211 + $0xa0] sm:$0xf]
      %v258 = vld [vmem:[%s211 + $0xa8] sm:$0xf]
      %v259 = vld [vmem:[%s211 + $0xac] sm:$0xf]
      %v260 = vld [vmem:[%s211 + $0xb4] sm:$0xf]
      %v261 = vld [vmem:[%s211 + $0xb8] sm:$0xf]
      %v262 = vld [vmem:[%s1] sm:$0xf]
      %v263 = vld [vmem:[%s1 + $0x4] sm:$0x3]
      %v264 = vld [vmem:[%s211 + $0x8] sm:$0x1]
      %v265 = vld [vmem:[%s211 + $0x14] sm:$0x1]
      %v266 = vld [vmem:[%s211 + $0x20] sm:$0x1]
      %v267 = vld [vmem:[%s211 + $0x2c] sm:$0x1]
      %v268 = vld [vmem:[%s211 + $0x38] sm:$0x1]
      %v269 = vld [vmem:[%s211 + $0x44] sm:$0x1]
      %v270 = vld [vmem:[%s211 + $0x50] sm:$0x1]
      %v271 = vld [vmem:[%s211 + $0x5c] sm:$0x1]
      %v272 = vld [vmem:[%s211 + $0x68] sm:$0x1]
      %v273 = vld [vmem:[%s211 + $0x74] sm:$0x1]
      %v274 = vld [vmem:[%s211 + $0x80] sm:$0x1]
      %v275 = vld [vmem:[%s211 + $0x8c] sm:$0x1]
      %v276 = vld [vmem:[%s211 + $0x98] sm:$0x1]
      %v277 = vld [vmem:[%s211 + $0xa4] sm:$0x1]
      %v278 = vld [vmem:[%s211 + $0xb0] sm:$0x1]
      %v279 = vld [vmem:[%s211 + $0xbc] sm:$0x1]
      %vm280 = vsmask.f32 3328
      %vm281 = vsmask.f32 7440
      %vm282 = vmor %vm280, %vm281
      %v284 = vshrl.u32 %v230, 16
      %v286 = vrot.slane %v284, 4
      %v287 = vshll.u32 %v230, 16
      %v289 = vrot.slane %v287, 5
      %v290 = vor.u32 %v286, %v289
      %v291 = vrot.slane %v290, 4
      %v293 = vshll.u32 %v231, 16
      %v295 = vrot.slane %v293, 5
      %v296 = vsel %vm282, %v291, %v295
      %v297 = vshrl.u32 %v231, 16
      %v299 = vrot.slane %v297, 4
      %v300 = vor.u32 %v299, %v295
      %v301 = vrot.slane %v300, 4
      %v303 = vshll.u32 %v264, 16
      %v305 = vrot.slane %v303, 5
      %v306 = vsel %vm282, %v301, %v305
      %v308 = vshrl.u32 %v232, 16
      %v310 = vrot.slane %v308, 4
      %v311 = vshll.u32 %v232, 16
      %v313 = vrot.slane %v311, 5
      %v314 = vor.u32 %v310, %v313
      %v315 = vrot.slane %v314, 4
      %v317 = vshll.u32 %v233, 16
      %v319 = vrot.slane %v317, 5
      %v320 = vsel %vm282, %v315, %v319
      %v321 = vshrl.u32 %v233, 16
      %v323 = vrot.slane %v321, 4
      %v324 = vor.u32 %v323, %v319
      %v325 = vrot.slane %v324, 4
      %v327 = vshll.u32 %v265, 16
      %v329 = vrot.slane %v327, 5
      %v330 = vsel %vm282, %v325, %v329
      %v332 = vshrl.u32 %v234, 16
      %v334 = vrot.slane %v332, 4
      %v335 = vshll.u32 %v234, 16
      %v337 = vrot.slane %v335, 5
      %v338 = vor.u32 %v334, %v337
      %v339 = vrot.slane %v338, 4
      %v341 = vshll.u32 %v235, 16
      %v343 = vrot.slane %v341, 5
      %v344 = vsel %vm282, %v339, %v343
      %v345 = vshrl.u32 %v235, 16
      %v347 = vrot.slane %v345, 4
      %v348 = vor.u32 %v347, %v343
      %v349 = vrot.slane %v348, 4
      %v351 = vshll.u32 %v266, 16
      %v353 = vrot.slane %v351, 5
      %v354 = vsel %vm282, %v349, %v353
      %v356 = vshrl.u32 %v236, 16
      %v358 = vrot.slane %v356, 4
      %v359 = vshll.u32 %v236, 16
      %v361 = vrot.slane %v359, 5
      %v362 = vor.u32 %v358, %v361
      %v363 = vrot.slane %v362, 4
      %v365 = vshll.u32 %v237, 16
      %v367 = vrot.slane %v365, 5
      %v368 = vsel %vm282, %v363, %v367
      %v369 = vshrl.u32 %v237, 16
      %v371 = vrot.slane %v369, 4
      %v372 = vor.u32 %v371, %v367
      %v373 = vrot.slane %v372, 4
      %v375 = vshll.u32 %v267, 16
      %v377 = vrot.slane %v375, 5
      %v378 = vsel %vm282, %v373, %v377
      %v380 = vshrl.u32 %v238, 16
      %v382 = vrot.slane %v380, 4
      %v383 = vshll.u32 %v238, 16
      %v385 = vrot.slane %v383, 5
      %v386 = vor.u32 %v382, %v385
      %v387 = vrot.slane %v386, 4
      %v389 = vshll.u32 %v239, 16
      %v391 = vrot.slane %v389, 5
      %v392 = vsel %vm282, %v387, %v391
      %v393 = vshrl.u32 %v239, 16
      %v395 = vrot.slane %v393, 4
      %v396 = vor.u32 %v395, %v391
      %v397 = vrot.slane %v396, 4
      %v399 = vshll.u32 %v268, 16
      %v401 = vrot.slane %v399, 5
      %v402 = vsel %vm282, %v397, %v401
      %v404 = vshrl.u32 %v240, 16
      %v406 = vrot.slane %v404, 4
      %v407 = vshll.u32 %v240, 16
      %v409 = vrot.slane %v407, 5
      %v410 = vor.u32 %v406, %v409
      %v411 = vrot.slane %v410, 4
      %v413 = vshll.u32 %v241, 16
      %v415 = vrot.slane %v413, 5
      %v416 = vsel %vm282, %v411, %v415
      %v417 = vshrl.u32 %v241, 16
      %v419 = vrot.slane %v417, 4
      %v420 = vor.u32 %v419, %v415
      %v421 = vrot.slane %v420, 4
      %v423 = vshll.u32 %v269, 16
      %v425 = vrot.slane %v423, 5
      %v426 = vsel %vm282, %v421, %v425
      %v428 = vshrl.u32 %v242, 16
      %v430 = vrot.slane %v428, 4
      %v431 = vshll.u32 %v242, 16
      %v433 = vrot.slane %v431, 5
      %v434 = vor.u32 %v430, %v433
      %v435 = vrot.slane %v434, 4
      %v437 = vshll.u32 %v243, 16
      %v439 = vrot.slane %v437, 5
      %v440 = vsel %vm282, %v435, %v439
      %v441 = vshrl.u32 %v243, 16
      %v443 = vrot.slane %v441, 4
      %v444 = vor.u32 %v443, %v439
      %v445 = vrot.slane %v444, 4
      %v447 = vshll.u32 %v270, 16
      %v449 = vrot.slane %v447, 5
      %v450 = vsel %vm282, %v445, %v449
      %v452 = vshrl.u32 %v244, 16
      %v454 = vrot.slane %v452, 4
      %v455 = vshll.u32 %v244, 16
      %v457 = vrot.slane %v455, 5
      %v458 = vor.u32 %v454, %v457
      %v459 = vrot.slane %v458, 4
      %v461 = vshll.u32 %v245, 16
      %v463 = vrot.slane %v461, 5
      %v464 = vsel %vm282, %v459, %v463
      %v465 = vshrl.u32 %v245, 16
      %v467 = vrot.slane %v465, 4
      %v468 = vor.u32 %v467, %v463
      %v469 = vrot.slane %v468, 4
      %v471 = vshll.u32 %v271, 16
      %v473 = vrot.slane %v471, 5
      %v474 = vsel %vm282, %v469, %v473
      %v476 = vshrl.u32 %v246, 16
      %v478 = vrot.slane %v476, 4
      %v479 = vshll.u32 %v246, 16
      %v481 = vrot.slane %v479, 5
      %v482 = vor.u32 %v478, %v481
      %v483 = vrot.slane %v482, 4
      %v485 = vshll.u32 %v247, 16
      %v487 = vrot.slane %v485, 5
      %v488 = vsel %vm282, %v483, %v487
      %v489 = vshrl.u32 %v247, 16
      %v491 = vrot.slane %v489, 4
      %v492 = vor.u32 %v491, %v487
      %v493 = vrot.slane %v492, 4
      %v495 = vshll.u32 %v272, 16
      %v497 = vrot.slane %v495, 5
      %v498 = vsel %vm282, %v493, %v497
      %v500 = vshrl.u32 %v248, 16
      %v502 = vrot.slane %v500, 4
      %v503 = vshll.u32 %v248, 16
      %v505 = vrot.slane %v503, 5
      %v506 = vor.u32 %v502, %v505
      %v507 = vrot.slane %v506, 4
      %v509 = vshll.u32 %v249, 16
      %v511 = vrot.slane %v509, 5
      %v512 = vsel %vm282, %v507, %v511
      %v513 = vshrl.u32 %v249, 16
      %v515 = vrot.slane %v513, 4
      %v516 = vor.u32 %v515, %v511
      %v517 = vrot.slane %v516, 4
      %v519 = vshll.u32 %v273, 16
      %v521 = vrot.slane %v519, 5
      %v522 = vsel %vm282, %v517, %v521
      %v524 = vshrl.u32 %v250, 16
      %v526 = vrot.slane %v524, 4
      %v527 = vshll.u32 %v250, 16
      %v529 = vrot.slane %v527, 5
      %v530 = vor.u32 %v526, %v529
      %v531 = vrot.slane %v530, 4
      %v533 = vshll.u32 %v251, 16
      %v535 = vrot.slane %v533, 5
      %v536 = vsel %vm282, %v531, %v535
      %v537 = vshrl.u32 %v251, 16
      %v539 = vrot.slane %v537, 4
      %v540 = vor.u32 %v539, %v535
      %v541 = vrot.slane %v540, 4
      %v543 = vshll.u32 %v274, 16
      %v545 = vrot.slane %v543, 5
      %v546 = vsel %vm282, %v541, %v545
      %v548 = vshrl.u32 %v252, 16
      %v550 = vrot.slane %v548, 4
      %v551 = vshll.u32 %v252, 16
      %v553 = vrot.slane %v551, 5
      %v554 = vor.u32 %v550, %v553
      %v555 = vrot.slane %v554, 4
      %v557 = vshll.u32 %v253, 16
      %v559 = vrot.slane %v557, 5
      %v560 = vsel %vm282, %v555, %v559
      %v561 = vshrl.u32 %v253, 16
      %v563 = vrot.slane %v561, 4
      %v564 = vor.u32 %v563, %v559
      %v565 = vrot.slane %v564, 4
      %v567 = vshll.u32 %v275, 16
      %v569 = vrot.slane %v567, 5
      %v570 = vsel %vm282, %v565, %v569
      %v572 = vshrl.u32 %v254, 16
      %v574 = vrot.slane %v572, 4
      %v575 = vshll.u32 %v254, 16
      %v577 = vrot.slane %v575, 5
      %v578 = vor.u32 %v574, %v577
      %v579 = vrot.slane %v578, 4
      %v581 = vshll.u32 %v255, 16
      %v583 = vrot.slane %v581, 5
      %v584 = vsel %vm282, %v579, %v583
      %v585 = vshrl.u32 %v255, 16
      %v587 = vrot.slane %v585, 4
      %v588 = vor.u32 %v587, %v583
      %v589 = vrot.slane %v588, 4
      %v591 = vshll.u32 %v276, 16
      %v593 = vrot.slane %v591, 5
      %v594 = vsel %vm282, %v589, %v593
      %v596 = vshrl.u32 %v256, 16
      %v598 = vrot.slane %v596, 4
      %v599 = vshll.u32 %v256, 16
      %v601 = vrot.slane %v599, 5
      %v602 = vor.u32 %v598, %v601
      %v603 = vrot.slane %v602, 4
      %v605 = vshll.u32 %v257, 16
      %v607 = vrot.slane %v605, 5
      %v608 = vsel %vm282, %v603, %v607
      %v609 = vshrl.u32 %v257, 16
      %v611 = vrot.slane %v609, 4
      %v612 = vor.u32 %v611, %v607
      %v613 = vrot.slane %v612, 4
      %v615 = vshll.u32 %v277, 16
      %v617 = vrot.slane %v615, 5
      %v618 = vsel %vm282, %v613, %v617
      %v620 = vshrl.u32 %v258, 16
      %v622 = vrot.slane %v620, 4
      %v623 = vshll.u32 %v258, 16
      %v625 = vrot.slane %v623, 5
      %v626 = vor.u32 %v622, %v625
      %v627 = vrot.slane %v626, 4
      %v629 = vshll.u32 %v259, 16
      %v631 = vrot.slane %v629, 5
      %v632 = vsel %vm282, %v627, %v631
      %v633 = vshrl.u32 %v259, 16
      %v635 = vrot.slane %v633, 4
      %v636 = vor.u32 %v635, %v631
      %v637 = vrot.slane %v636, 4
      %v639 = vshll.u32 %v278, 16
      %v641 = vrot.slane %v639, 5
      %v642 = vsel %vm282, %v637, %v641
      %v644 = vshrl.u32 %v260, 16
      %v646 = vrot.slane %v644, 4
      %v647 = vshll.u32 %v260, 16
      %v649 = vrot.slane %v647, 5
      %v650 = vor.u32 %v646, %v649
      %v651 = vrot.slane %v650, 4
      %v653 = vshll.u32 %v261, 16
      %v655 = vrot.slane %v653, 5
      %v656 = vsel %vm282, %v651, %v655
      %v657 = vshrl.u32 %v261, 16
      %v659 = vrot.slane %v657, 4
      %v660 = vor.u32 %v659, %v655
      %v661 = vrot.slane %v660, 4
      %v663 = vshll.u32 %v279, 16
      %v665 = vrot.slane %v663, 5
      %v666 = vsel %vm282, %v661, %v665
      %s667 = scalar_lea.vmem %s1, 8
      %v668 = vld [vmem:[%s667] sm:$0xf]
      %v669 = vld [vmem:[%s667 + $0x4] sm:$0x3]
      %v670 = vunpack.c.l.b16 %v296
      %v671 = vunpack.c.l.b16 %v306
      %v672 = vunpack.c.l.b16 %v320
      %v673 = vunpack.c.l.b16 %v330
      %v674 = vunpack.c.l.b16 %v344
      %v675 = vunpack.c.l.b16 %v354
      %v676 = vunpack.c.l.b16 %v368
      %v677 = vunpack.c.l.b16 %v378
      %v678 = vunpack.c.l.b16 %v392
      %v679 = vunpack.c.l.b16 %v402
      %v680 = vunpack.c.l.b16 %v416
      %v681 = vunpack.c.l.b16 %v426
      %v682 = vunpack.c.l.b16 %v440
      %v683 = vunpack.c.l.b16 %v450
      %v684 = vunpack.c.l.b16 %v464
      %v685 = vunpack.c.l.b16 %v474
      %v686 = vunpack.c.l.b16 %v488
      %v687 = vunpack.c.l.b16 %v498
      %v688 = vunpack.c.l.b16 %v512
      %v689 = vunpack.c.l.b16 %v522
      %v690 = vunpack.c.l.b16 %v536
      %v691 = vunpack.c.l.b16 %v546
      %v692 = vunpack.c.l.b16 %v560
      %v693 = vunpack.c.l.b16 %v570
      %v694 = vunpack.c.l.b16 %v584
      %v695 = vunpack.c.l.b16 %v594
      %v696 = vunpack.c.l.b16 %v608
      %v697 = vunpack.c.l.b16 %v618
      %v698 = vunpack.c.l.b16 %v632
      %v699 = vunpack.c.l.b16 %v642
      %v700 = vunpack.c.l.b16 %v656
      %v701 = vunpack.c.l.b16 %v666
      %v702 = vpack.c.b16 %v671, %v670
      %v703 = vpack.c.b16 %v673, %v672
      %v704 = vpack.c.b16 %v675, %v674
      %v705 = vpack.c.b16 %v677, %v676
      %v706 = vpack.c.b16 %v679, %v678
      %v707 = vpack.c.b16 %v681, %v680
      %v708 = vpack.c.b16 %v683, %v682
      %v709 = vpack.c.b16 %v685, %v684
      %v710 = vpack.c.b16 %v687, %v686
      %v711 = vpack.c.b16 %v689, %v688
      %v712 = vpack.c.b16 %v691, %v690
      %v713 = vpack.c.b16 %v693, %v692
      %v714 = vpack.c.b16 %v695, %v694
      %v715 = vpack.c.b16 %v697, %v696
      %v716 = vpack.c.b16 %v699, %v698
      %v717 = vpack.c.b16 %v701, %v700
      %v720 = vunpack.c.l.b16 %v668
      %v721 = vunpack.c.l.b16 %v669
      %v722 = vpack.c.b16 %v721, %v720
      %vm723 = vcmask 97280
      %v725 = vsel %vm723, %v702, 0
      %v728 = vsel %vm723, %v703, 0
      %v731 = vsel %vm723, %v704, 0
      %v734 = vsel %vm723, %v705, 0
      %v737 = vsel %vm723, %v706, 0
      %v740 = vsel %vm723, %v707, 0
      %v743 = vsel %vm723, %v708, 0
      %v746 = vsel %vm723, %v709, 0
      %v749 = vsel %vm723, %v710, 0
      %v752 = vsel %vm723, %v711, 0
      %v755 = vsel %vm723, %v712, 0
      %v758 = vsel %vm723, %v713, 0
      %v761 = vsel %vm723, %v714, 0
      %v764 = vsel %vm723, %v715, 0
      %v767 = vsel %vm723, %v716, 0
      %v770 = vsel %vm723, %v717, 0
      %vm772 = vcmask 1045504
      %v774 = vsel %vm772, %v722, 0
      %776 = vmatprep.subr.bf16.mxu0 0
      %777 = vmatpush1.bf16.msra.mxu0 %v774
      %778 = vmatprep.subr.bf16.mxu0 0
      %779 = vmatpush1.bf16.msra.mxu0 0
      %780 = vmatprep.subr.bf16.mxu0 0
      %781 = vmatpush1.bf16.msra.mxu0 0
      %782 = vmatprep.subr.bf16.mxu0 0
      %783 = vmatpush1.bf16.msra.mxu0 0
      %784 = vmatprep.subr.bf16.mxu0 0
      %785 = vmatpush1.bf16.msra.mxu0 0
      %786 = vmatprep.subr.bf16.mxu0 0
      %787 = vmatpush1.bf16.msra.mxu0 0
      %788 = vmatprep.subr.bf16.mxu0 0
      %789 = vmatpush1.bf16.msra.mxu0 0
      %790 = vmatprep.subr.bf16.mxu0 0
      %791 = vmatpush1.bf16.msra.mxu0 0
      %792 = vmatprep.subr.bf16.mxu0 0
      %793 = vmatpush1.bf16.msra.mxu0 0
      %794 = vmatprep.subr.bf16.mxu0 0
      %795 = vmatpush1.bf16.msra.mxu0 0
      %796 = vmatprep.subr.bf16.mxu0 0
      %797 = vmatpush1.bf16.msra.mxu0 0
      %798 = vmatprep.subr.bf16.mxu0 0
      %799 = vmatpush1.bf16.msra.mxu0 0
      %800 = vmatprep.subr.bf16.mxu0 0
      %801 = vmatpush1.bf16.msra.mxu0 0
      %802 = vmatprep.subr.bf16.mxu0 0
      %803 = vmatpush1.bf16.msra.mxu0 0
      %804 = vmatprep.subr.bf16.mxu0 0
      %805 = vmatpush1.bf16.msra.mxu0 0
      %806 = vmatprep.subr.bf16.mxu0 0
      %807 = vmatpush1.bf16.msra.mxu0 0
      %808 = vmatprep.mubr.bf16.mxu0 0
      %809 = vmatmul.mubr.bf16.gmra.mrb[0].mxu0 %v725
      %v810 = vpop.f32.mrb[0].mxu0
      %v811 = vadd.f32 0.0, %v810
      %v812 = vpop.f32.mrb[0].mxu0
      %v813 = vpop.f32.mrb[0].mxu0
      %v814 = vadd.f32 0.0, %v813
      %v815 = vpop.f32.mrb[0].mxu0
      %816 = vmatprep.mubr.bf16.mxu0 0
      %817 = vmatmul.mubr.bf16.gmra.mrb[0].mxu0 %v728
      %v818 = vpop.f32.mrb[0].mxu0
      %v819 = vadd.f32 0.0, %v818
      %v820 = vpop.f32.mrb[0].mxu0
      %v821 = vpop.f32.mrb[0].mxu0
      %v822 = vadd.f32 0.0, %v821
      %v823 = vpop.f32.mrb[0].mxu0
      %824 = vmatprep.mubr.bf16.mxu0 0
      %825 = vmatmul.mubr.bf16.gmra.mrb[0].mxu0 %v731
      %v826 = vpop.f32.mrb[0].mxu0
      %v827 = vadd.f32 0.0, %v826
      %v828 = vpop.f32.mrb[0].mxu0
      %v829 = vpop.f32.mrb[0].mxu0
      %v830 = vadd.f32 0.0, %v829
      %v831 = vpop.f32.mrb[0].mxu0
      %832 = vmatprep.mubr.bf16.mxu0 0
      %833 = vmatmul.mubr.bf16.gmra.mrb[0].mxu0 %v734
      %v834 = vpop.f32.mrb[0].mxu0
      %v835 = vadd.f32 0.0, %v834
      %v836 = vpop.f32.mrb[0].mxu0
      %v837 = vpop.f32.mrb[0].mxu0
      %v838 = vadd.f32 0.0, %v837
      %v839 = vpop.f32.mrb[0].mxu0
      %840 = vmatprep.mubr.bf16.mxu0 0
      %841 = vmatmul.mubr.bf16.gmra.mrb[0].mxu0 %v737
      %v842 = vpop.f32.mrb[0].mxu0
      %v843 = vadd.f32 0.0, %v842
      %v844 = vpop.f32.mrb[0].mxu0
      %v845 = vpop.f32.mrb[0].mxu0
      %v846 = vadd.f32 0.0, %v845
      %v847 = vpop.f32.mrb[0].mxu0
      %848 = vmatprep.mubr.bf16.mxu0 0
      %849 = vmatmul.mubr.bf16.gmra.mrb[0].mxu0 %v740
      %v850 = vpop.f32.mrb[0].mxu0
      %v851 = vadd.f32 0.0, %v850
      %v852 = vpop.f32.mrb[0].mxu0
      %v853 = vpop.f32.mrb[0].mxu0
      %v854 = vadd.f32 0.0, %v853
      %v855 = vpop.f32.mrb[0].mxu0
      %856 = vmatprep.mubr.bf16.mxu0 0
      %857 = vmatmul.mubr.bf16.gmra.mrb[0].mxu0 %v743
      %v858 = vpop.f32.mrb[0].mxu0
      %v859 = vadd.f32 0.0, %v858
      %v860 = vpop.f32.mrb[0].mxu0
      %v861 = vpop.f32.mrb[0].mxu0
      %v862 = vadd.f32 0.0, %v861
      %v863 = vpop.f32.mrb[0].mxu0
      %864 = vmatprep.mubr.bf16.mxu0 0
      %865 = vmatmul.mubr.bf16.gmra.mrb[0].mxu0 %v746
      %v866 = vpop.f32.mrb[0].mxu0
      %v867 = vadd.f32 0.0, %v866
      %v868 = vpop.f32.mrb[0].mxu0
      %v869 = vpop.f32.mrb[0].mxu0
      %v870 = vadd.f32 0.0, %v869
      %v871 = vpop.f32.mrb[0].mxu0
      %872 = vmatprep.mubr.bf16.mxu0 0
      %873 = vmatmul.mubr.bf16.gmra.mrb[0].mxu0 %v749
      %v874 = vpop.f32.mrb[0].mxu0
      %v875 = vadd.f32 0.0, %v874
      %v876 = vpop.f32.mrb[0].mxu0
      %v877 = vpop.f32.mrb[0].mxu0
      %v878 = vadd.f32 0.0, %v877
      %v879 = vpop.f32.mrb[0].mxu0
      %880 = vmatprep.mubr.bf16.mxu0 0
      %881 = vmatmul.mubr.bf16.gmra.mrb[0].mxu0 %v752
      %v882 = vpop.f32.mrb[0].mxu0
      %v883 = vadd.f32 0.0, %v882
      %v884 = vpop.f32.mrb[0].mxu0
      %v885 = vpop.f32.mrb[0].mxu0
      %v886 = vadd.f32 0.0, %v885
      %v887 = vpop.f32.mrb[0].mxu0
      %888 = vmatprep.mubr.bf16.mxu0 0
      %889 = vmatmul.mubr.bf16.gmra.mrb[0].mxu0 %v755
      %v890 = vpop.f32.mrb[0].mxu0
      %v891 = vadd.f32 0.0, %v890
      %v892 = vpop.f32.mrb[0].mxu0
      %v893 = vpop.f32.mrb[0].mxu0
      %v894 = vadd.f32 0.0, %v893
      %v895 = vpop.f32.mrb[0].mxu0
      %896 = vmatprep.mubr.bf16.mxu0 0
      %897 = vmatmul.mubr.bf16.gmra.mrb[0].mxu0 %v758
      %v898 = vpop.f32.mrb[0].mxu0
      %v899 = vadd.f32 0.0, %v898
      %v900 = vpop.f32.mrb[0].mxu0
      %v901 = vpop.f32.mrb[0].mxu0
      %v902 = vadd.f32 0.0, %v901
      %v903 = vpop.f32.mrb[0].mxu0
      %904 = vmatprep.mubr.bf16.mxu0 0
      %905 = vmatmul.mubr.bf16.gmra.mrb[0].mxu0 %v761
      %v906 = vpop.f32.mrb[0].mxu0
      %v907 = vadd.f32 0.0, %v906
      %v908 = vpop.f32.mrb[0].mxu0
      %v909 = vpop.f32.mrb[0].mxu0
      %v910 = vadd.f32 0.0, %v909
      %v911 = vpop.f32.mrb[0].mxu0
      %912 = vmatprep.mubr.bf16.mxu0 0
      %913 = vmatmul.mubr.bf16.gmra.mrb[0].mxu0 %v764
      %v914 = vpop.f32.mrb[0].mxu0
      %v915 = vadd.f32 0.0, %v914
      %v916 = vpop.f32.mrb[0].mxu0
      %v917 = vpop.f32.mrb[0].mxu0
      %v918 = vadd.f32 0.0, %v917
      %v919 = vpop.f32.mrb[0].mxu0
      %920 = vmatprep.mubr.bf16.mxu0 0
      %921 = vmatmul.mubr.bf16.gmra.mrb[0].mxu0 %v767
      %v922 = vpop.f32.mrb[0].mxu0
      %v923 = vadd.f32 0.0, %v922
      %v924 = vpop.f32.mrb[0].mxu0
      %v925 = vpop.f32.mrb[0].mxu0
      %v926 = vadd.f32 0.0, %v925
      %v927 = vpop.f32.mrb[0].mxu0
      %928 = vmatprep.mubr.bf16.mxu0 0
      %929 = vmatmul.mubr.bf16.gmra.mrb[0].mxu0 %v770
      %v930 = vpop.f32.mrb[0].mxu0
      %v931 = vadd.f32 0.0, %v930
      %v932 = vpop.f32.mrb[0].mxu0
      %v933 = vpop.f32.mrb[0].mxu0
      %v934 = vadd.f32 0.0, %v933
      %v935 = vpop.f32.mrb[0].mxu0
      %936 = vdwg.mxu0
      %v969 = vunpack.c.l.b16 %v230
      %v970 = vunpack.c.l.b16 %v231
      %v971 = vunpack.c.l.b16 %v232
      %v972 = vunpack.c.l.b16 %v233
      %v973 = vunpack.c.l.b16 %v234
      %v974 = vunpack.c.l.b16 %v235
      %v975 = vunpack.c.l.b16 %v236
      %v976 = vunpack.c.l.b16 %v237
      %v977 = vunpack.c.l.b16 %v238
      %v978 = vunpack.c.l.b16 %v239
      %v979 = vunpack.c.l.b16 %v240
      %v980 = vunpack.c.l.b16 %v241
      %v981 = vunpack.c.l.b16 %v242
      %v982 = vunpack.c.l.b16 %v243
      %v983 = vunpack.c.l.b16 %v244
      %v984 = vunpack.c.l.b16 %v245
      %v985 = vunpack.c.l.b16 %v246
      %v986 = vunpack.c.l.b16 %v247
      %v987 = vunpack.c.l.b16 %v248
      %v988 = vunpack.c.l.b16 %v249
      %v989 = vunpack.c.l.b16 %v250
      %v990 = vunpack.c.l.b16 %v251
      %v991 = vunpack.c.l.b16 %v252
      %v992 = vunpack.c.l.b16 %v253
      %v993 = vunpack.c.l.b16 %v254
      %v994 = vunpack.c.l.b16 %v255
      %v995 = vunpack.c.l.b16 %v256
      %v996 = vunpack.c.l.b16 %v257
      %v997 = vunpack.c.l.b16 %v258
      %v998 = vunpack.c.l.b16 %v259
      %v999 = vunpack.c.l.b16 %v260
      %v1000 = vunpack.c.l.b16 %v261
      %v1001 = vpack.c.b16 %v970, %v969
      %v1002 = vpack.c.b16 %v972, %v971
      %v1003 = vpack.c.b16 %v974, %v973
      %v1004 = vpack.c.b16 %v976, %v975
      %v1005 = vpack.c.b16 %v978, %v977
      %v1006 = vpack.c.b16 %v980, %v979
      %v1007 = vpack.c.b16 %v982, %v981
      %v1008 = vpack.c.b16 %v984, %v983
      %v1009 = vpack.c.b16 %v986, %v985
      %v1010 = vpack.c.b16 %v988, %v987
      %v1011 = vpack.c.b16 %v990, %v989
      %v1012 = vpack.c.b16 %v992, %v991
      %v1013 = vpack.c.b16 %v994, %v993
      %v1014 = vpack.c.b16 %v996, %v995
      %v1015 = vpack.c.b16 %v998, %v997
      %v1016 = vpack.c.b16 %v1000, %v999
      %v1019 = vunpack.c.l.b16 %v262
      %v1020 = vunpack.c.l.b16 %v263
      %v1021 = vpack.c.b16 %v1020, %v1019
      %v1023 = vsel %vm723, %v1001, 0
      %v1026 = vsel %vm723, %v1002, 0
      %v1029 = vsel %vm723, %v1003, 0
      %v1032 = vsel %vm723, %v1004, 0
      %v1035 = vsel %vm723, %v1005, 0
      %v1038 = vsel %vm723, %v1006, 0
      %v1041 = vsel %vm723, %v1007, 0
      %v1044 = vsel %vm723, %v1008, 0
      %v1047 = vsel %vm723, %v1009, 0
      %v1050 = vsel %vm723, %v1010, 0
      %v1053 = vsel %vm723, %v1011, 0
      %v1056 = vsel %vm723, %v1012, 0
      %v1059 = vsel %vm723, %v1013, 0
      %v1062 = vsel %vm723, %v1014, 0
      %v1065 = vsel %vm723, %v1015, 0
      %v1068 = vsel %vm723, %v1016, 0
      %v1071 = vsel %vm772, %v1021, 0
      %1073 = vmatprep.subr.bf16.mxu0 0
      %1074 = vmatpush1.bf16.msra.mxu0 %v1071
      %1075 = vmatprep.subr.bf16.mxu0 0
      %1076 = vmatpush1.bf16.msra.mxu0 0
      %1077 = vmatprep.subr.bf16.mxu0 0
      %1078 = vmatpush1.bf16.msra.mxu0 0
      %1079 = vmatprep.subr.bf16.mxu0 0
      %1080 = vmatpush1.bf16.msra.mxu0 0
      %1081 = vmatprep.subr.bf16.mxu0 0
      %1082 = vmatpush1.bf16.msra.mxu0 0
      %1083 = vmatprep.subr.bf16.mxu0 0
      %1084 = vmatpush1.bf16.msra.mxu0 0
      %1085 = vmatprep.subr.bf16.mxu0 0
      %1086 = vmatpush1.bf16.msra.mxu0 0
      %1087 = vmatprep.subr.bf16.mxu0 0
      %1088 = vmatpush1.bf16.msra.mxu0 0
      %1089 = vmatprep.subr.bf16.mxu0 0
      %1090 = vmatpush1.bf16.msra.mxu0 0
      %1091 = vmatprep.subr.bf16.mxu0 0
      %1092 = vmatpush1.bf16.msra.mxu0 0
      %1093 = vmatprep.subr.bf16.mxu0 0
      %1094 = vmatpush1.bf16.msra.mxu0 0
      %1095 = vmatprep.subr.bf16.mxu0 0
      %1096 = vmatpush1.bf16.msra.mxu0 0
      %1097 = vmatprep.subr.bf16.mxu0 0
      %1098 = vmatpush1.bf16.msra.mxu0 0
      %1099 = vmatprep.subr.bf16.mxu0 0
      %1100 = vmatpush1.bf16.msra.mxu0 0
      %1101 = vmatprep.subr.bf16.mxu0 0
      %1102 = vmatpush1.bf16.msra.mxu0 0
      %1103 = vmatprep.subr.bf16.mxu0 0
      %1104 = vmatpush1.bf16.msra.mxu0 0
      %1105 = vmatprep.mubr.bf16.mxu0 0
      %1106 = vmatmul.mubr.bf16.gmra.mrb[0].mxu0 %v1023
      %v1107 = vpop.f32.mrb[0].mxu0
      %v1108 = vadd.f32 %v811, %v1107
      %v1109 = vpop.f32.mrb[0].mxu0
      %v1110 = vpop.f32.mrb[0].mxu0
      %v1111 = vadd.f32 %v814, %v1110
      %v1112 = vpop.f32.mrb[0].mxu0
      %1113 = vmatprep.mubr.bf16.mxu0 0
      %1114 = vmatmul.mubr.bf16.gmra.mrb[0].mxu0 %v1026
      %v1115 = vpop.f32.mrb[0].mxu0
      %v1116 = vadd.f32 %v819, %v1115
      %v1117 = vpop.f32.mrb[0].mxu0
      %v1118 = vpop.f32.mrb[0].mxu0
      %v1119 = vadd.f32 %v822, %v1118
      %v1120 = vpop.f32.mrb[0].mxu0
      %1121 = vmatprep.mubr.bf16.mxu0 0
      %1122 = vmatmul.mubr.bf16.gmra.mrb[0].mxu0 %v1029
      %v1123 = vpop.f32.mrb[0].mxu0
      %v1124 = vadd.f32 %v827, %v1123
      %v1125 = vpop.f32.mrb[0].mxu0
      %v1126 = vpop.f32.mrb[0].mxu0
      %v1127 = vadd.f32 %v830, %v1126
      %v1128 = vpop.f32.mrb[0].mxu0
      %1129 = vmatprep.mubr.bf16.mxu0 0
      %1130 = vmatmul.mubr.bf16.gmra.mrb[0].mxu0 %v1032
      %v1131 = vpop.f32.mrb[0].mxu0
      %v1132 = vadd.f32 %v835, %v1131
      %v1133 = vpop.f32.mrb[0].mxu0
      %v1134 = vpop.f32.mrb[0].mxu0
      %v1135 = vadd.f32 %v838, %v1134
      %v1136 = vpop.f32.mrb[0].mxu0
      %1137 = vmatprep.mubr.bf16.mxu0 0
      %1138 = vmatmul.mubr.bf16.gmra.mrb[0].mxu0 %v1035
      %v1139 = vpop.f32.mrb[0].mxu0
      %v1140 = vadd.f32 %v843, %v1139
      %v1141 = vpop.f32.mrb[0].mxu0
      %v1142 = vpop.f32.mrb[0].mxu0
      %v1143 = vadd.f32 %v846, %v1142
      %v1144 = vpop.f32.mrb[0].mxu0
      %1145 = vmatprep.mubr.bf16.mxu0 0
      %1146 = vmatmul.mubr.bf16.gmra.mrb[0].mxu0 %v1038
      %v1147 = vpop.f32.mrb[0].mxu0
      %v1148 = vadd.f32 %v851, %v1147
      %v1149 = vpop.f32.mrb[0].mxu0
      %v1150 = vpop.f32.mrb[0].mxu0
      %v1151 = vadd.f32 %v854, %v1150
      %v1152 = vpop.f32.mrb[0].mxu0
      %1153 = vmatprep.mubr.bf16.mxu0 0
      %1154 = vmatmul.mubr.bf16.gmra.mrb[0].mxu0 %v1041
      %v1155 = vpop.f32.mrb[0].mxu0
      %v1156 = vadd.f32 %v859, %v1155
      %v1157 = vpop.f32.mrb[0].mxu0
      %v1158 = vpop.f32.mrb[0].mxu0
      %v1159 = vadd.f32 %v862, %v1158
      %v1160 = vpop.f32.mrb[0].mxu0
      %1161 = vmatprep.mubr.bf16.mxu0 0
      %1162 = vmatmul.mubr.bf16.gmra.mrb[0].mxu0 %v1044
      %v1163 = vpop.f32.mrb[0].mxu0
      %v1164 = vadd.f32 %v867, %v1163
      %v1165 = vpop.f32.mrb[0].mxu0
      %v1166 = vpop.f32.mrb[0].mxu0
      %v1167 = vadd.f32 %v870, %v1166
      %v1168 = vpop.f32.mrb[0].mxu0
      %1169 = vmatprep.mubr.bf16.mxu0 0
      %1170 = vmatmul.mubr.bf16.gmra.mrb[0].mxu0 %v1047
      %v1171 = vpop.f32.mrb[0].mxu0
      %v1172 = vadd.f32 %v875, %v1171
      %v1173 = vpop.f32.mrb[0].mxu0
      %v1174 = vpop.f32.mrb[0].mxu0
      %v1175 = vadd.f32 %v878, %v1174
      %v1176 = vpop.f32.mrb[0].mxu0
      %1177 = vmatprep.mubr.bf16.mxu0 0
      %1178 = vmatmul.mubr.bf16.gmra.mrb[0].mxu0 %v1050
      %v1179 = vpop.f32.mrb[0].mxu0
      %v1180 = vadd.f32 %v883, %v1179
      %v1181 = vpop.f32.mrb[0].mxu0
      %v1182 = vpop.f32.mrb[0].mxu0
      %v1183 = vadd.f32 %v886, %v1182
      %v1184 = vpop.f32.mrb[0].mxu0
      %1185 = vmatprep.mubr.bf16.mxu0 0
      %1186 = vmatmul.mubr.bf16.gmra.mrb[0].mxu0 %v1053
      %v1187 = vpop.f32.mrb[0].mxu0
      %v1188 = vadd.f32 %v891, %v1187
      %v1189 = vpop.f32.mrb[0].mxu0
      %v1190 = vpop.f32.mrb[0].mxu0
      %v1191 = vadd.f32 %v894, %v1190
      %v1192 = vpop.f32.mrb[0].mxu0
      %1193 = vmatprep.mubr.bf16.mxu0 0
      %1194 = vmatmul.mubr.bf16.gmra.mrb[0].mxu0 %v1056
      %v1195 = vpop.f32.mrb[0].mxu0
      %v1196 = vadd.f32 %v899, %v1195
      %v1197 = vpop.f32.mrb[0].mxu0
      %v1198 = vpop.f32.mrb[0].mxu0
      %v1199 = vadd.f32 %v902, %v1198
      %v1200 = vpop.f32.mrb[0].mxu0
      %1201 = vmatprep.mubr.bf16.mxu0 0
      %1202 = vmatmul.mubr.bf16.gmra.mrb[0].mxu0 %v1059
      %v1203 = vpop.f32.mrb[0].mxu0
      %v1204 = vadd.f32 %v907, %v1203
      %v1205 = vpop.f32.mrb[0].mxu0
      %v1206 = vpop.f32.mrb[0].mxu0
      %v1207 = vadd.f32 %v910, %v1206
      %v1208 = vpop.f32.mrb[0].mxu0
      %1209 = vmatprep.mubr.bf16.mxu0 0
      %1210 = vmatmul.mubr.bf16.gmra.mrb[0].mxu0 %v1062
      %v1211 = vpop.f32.mrb[0].mxu0
      %v1212 = vadd.f32 %v915, %v1211
      %v1213 = vpop.f32.mrb[0].mxu0
      %v1214 = vpop.f32.mrb[0].mxu0
      %v1215 = vadd.f32 %v918, %v1214
      %v1216 = vpop.f32.mrb[0].mxu0
      %1217 = vmatprep.mubr.bf16.mxu0 0
      %1218 = vmatmul.mubr.bf16.gmra.mrb[0].mxu0 %v1065
      %v1219 = vpop.f32.mrb[0].mxu0
      %v1220 = vadd.f32 %v923, %v1219
      %v1221 = vpop.f32.mrb[0].mxu0
      %v1222 = vpop.f32.mrb[0].mxu0
      %v1223 = vadd.f32 %v926, %v1222
      %v1224 = vpop.f32.mrb[0].mxu0
      %1225 = vmatprep.mubr.bf16.mxu0 0
      %1226 = vmatmul.mubr.bf16.gmra.mrb[0].mxu0 %v1068
      %v1227 = vpop.f32.mrb[0].mxu0
      %v1228 = vadd.f32 %v931, %v1227
      %v1229 = vpop.f32.mrb[0].mxu0
      %v1230 = vpop.f32.mrb[0].mxu0
      %v1231 = vadd.f32 %v934, %v1230
      %v1232 = vpop.f32.mrb[0].mxu0
      %1233 = vdwg.mxu0
      %v1234 = vld [vmem:[%s211] sm:$0xe]
      %v1235 = vld [vmem:[%s211 + $0xc] sm:$0xe]
      %v1236 = vld [vmem:[%s211 + $0x18] sm:$0xe]
      %v1237 = vld [vmem:[%s211 + $0x24] sm:$0xe]
      %v1238 = vld [vmem:[%s211 + $0x30] sm:$0xe]
      %v1239 = vld [vmem:[%s211 + $0x3c] sm:$0xe]
      %v1240 = vld [vmem:[%s211 + $0x48] sm:$0xe]
      %v1241 = vld [vmem:[%s211 + $0x54] sm:$0xe]
      %v1242 = vld [vmem:[%s211 + $0x60] sm:$0xe]
      %v1243 = vld [vmem:[%s211 + $0x6c] sm:$0xe]
      %v1244 = vld [vmem:[%s211 + $0x78] sm:$0xe]
      %v1245 = vld [vmem:[%s211 + $0x84] sm:$0xe]
      %v1246 = vld [vmem:[%s211 + $0x90] sm:$0xe]
      %v1247 = vld [vmem:[%s211 + $0x9c] sm:$0xe]
      %v1248 = vld [vmem:[%s211 + $0xa8] sm:$0xe]
      %v1249 = vld [vmem:[%s211 + $0xb4] sm:$0xe]
      %vm1282 = vcmask 1042432
      %vm1283 = vcmask 1046532
      %vm1284 = vmor %vm1282, %vm1283
      %v1285 = vrot.slane %v1234, 5
      %v1286 = vrot.slane %v1285, 4
      %v1287 = vrot.slane %v231, 5
      %v1288 = vsel %vm1284, %v1286, %v1287
      %v1289 = vrot.slane %v1287, 4
      %v1290 = vrot.slane %v264, 5
      %v1291 = vsel %vm1284, %v1289, %v1290
      %v1292 = vrot.slane %v1235, 5
      %v1293 = vrot.slane %v1292, 4
      %v1294 = vrot.slane %v233, 5
      %v1295 = vsel %vm1284, %v1293, %v1294
      %v1296 = vrot.slane %v1294, 4
      %v1297 = vrot.slane %v265, 5
      %v1298 = vsel %vm1284, %v1296, %v1297
      %v1299 = vrot.slane %v1236, 5
      %v1300 = vrot.slane %v1299, 4
      %v1301 = vrot.slane %v235, 5
      %v1302 = vsel %vm1284, %v1300, %v1301
      %v1303 = vrot.slane %v1301, 4
      %v1304 = vrot.slane %v266, 5
      %v1305 = vsel %vm1284, %v1303, %v1304
      %v1306 = vrot.slane %v1237, 5
      %v1307 = vrot.slane %v1306, 4
      %v1308 = vrot.slane %v237, 5
      %v1309 = vsel %vm1284, %v1307, %v1308
      %v1310 = vrot.slane %v1308, 4
      %v1311 = vrot.slane %v267, 5
      %v1312 = vsel %vm1284, %v1310, %v1311
      %v1313 = vrot.slane %v1238, 5
      %v1314 = vrot.slane %v1313, 4
      %v1315 = vrot.slane %v239, 5
      %v1316 = vsel %vm1284, %v1314, %v1315
      %v1317 = vrot.slane %v1315, 4
      %v1318 = vrot.slane %v268, 5
      %v1319 = vsel %vm1284, %v1317, %v1318
      %v1320 = vrot.slane %v1239, 5
      %v1321 = vrot.slane %v1320, 4
      %v1322 = vrot.slane %v241, 5
      %v1323 = vsel %vm1284, %v1321, %v1322
      %v1324 = vrot.slane %v1322, 4
      %v1325 = vrot.slane %v269, 5
      %v1326 = vsel %vm1284, %v1324, %v1325
      %v1327 = vrot.slane %v1240, 5
      %v1328 = vrot.slane %v1327, 4
      %v1329 = vrot.slane %v243, 5
      %v1330 = vsel %vm1284, %v1328, %v1329
      %v1331 = vrot.slane %v1329, 4
      %v1332 = vrot.slane %v270, 5
      %v1333 = vsel %vm1284, %v1331, %v1332
      %v1334 = vrot.slane %v1241, 5
      %v1335 = vrot.slane %v1334, 4
      %v1336 = vrot.slane %v245, 5
      %v1337 = vsel %vm1284, %v1335, %v1336
      %v1338 = vrot.slane %v1336, 4
      %v1339 = vrot.slane %v271, 5
      %v1340 = vsel %vm1284, %v1338, %v1339
      %v1341 = vrot.slane %v1242, 5
      %v1342 = vrot.slane %v1341, 4
      %v1343 = vrot.slane %v247, 5
      %v1344 = vsel %vm1284, %v1342, %v1343
      %v1345 = vrot.slane %v1343, 4
      %v1346 = vrot.slane %v272, 5
      %v1347 = vsel %vm1284, %v1345, %v1346
      %v1348 = vrot.slane %v1243, 5
      %v1349 = vrot.slane %v1348, 4
      %v1350 = vrot.slane %v249, 5
      %v1351 = vsel %vm1284, %v1349, %v1350
      %v1352 = vrot.slane %v1350, 4
      %v1353 = vrot.slane %v273, 5
      %v1354 = vsel %vm1284, %v1352, %v1353
      %v1355 = vrot.slane %v1244, 5
      %v1356 = vrot.slane %v1355, 4
      %v1357 = vrot.slane %v251, 5
      %v1358 = vsel %vm1284, %v1356, %v1357
      %v1359 = vrot.slane %v1357, 4
      %v1360 = vrot.slane %v274, 5
      %v1361 = vsel %vm1284, %v1359, %v1360
      %v1362 = vrot.slane %v1245, 5
      %v1363 = vrot.slane %v1362, 4
      %v1364 = vrot.slane %v253, 5
      %v1365 = vsel %vm1284, %v1363, %v1364
      %v1366 = vrot.slane %v1364, 4
      %v1367 = vrot.slane %v275, 5
      %v1368 = vsel %vm1284, %v1366, %v1367
      %v1369 = vrot.slane %v1246, 5
      %v1370 = vrot.slane %v1369, 4
      %v1371 = vrot.slane %v255, 5
      %v1372 = vsel %vm1284, %v1370, %v1371
      %v1373 = vrot.slane %v1371, 4
      %v1374 = vrot.slane %v276, 5
      %v1375 = vsel %vm1284, %v1373, %v1374
      %v1376 = vrot.slane %v1247, 5
      %v1377 = vrot.slane %v1376, 4
      %v1378 = vrot.slane %v257, 5
      %v1379 = vsel %vm1284, %v1377, %v1378
      %v1380 = vrot.slane %v1378, 4
      %v1381 = vrot.slane %v277, 5
      %v1382 = vsel %vm1284, %v1380, %v1381
      %v1383 = vrot.slane %v1248, 5
      %v1384 = vrot.slane %v1383, 4
      %v1385 = vrot.slane %v259, 5
      %v1386 = vsel %vm1284, %v1384, %v1385
      %v1387 = vrot.slane %v1385, 4
      %v1388 = vrot.slane %v278, 5
      %v1389 = vsel %vm1284, %v1387, %v1388
      %v1390 = vrot.slane %v1249, 5
      %v1391 = vrot.slane %v1390, 4
      %v1392 = vrot.slane %v261, 5
      %v1393 = vsel %vm1284, %v1391, %v1392
      %v1394 = vrot.slane %v1392, 4
      %v1395 = vrot.slane %v279, 5
      %v1396 = vsel %vm1284, %v1394, %v1395
      %s1397 = scalar_lea.vmem %s1, 16
      %v1398 = vld [vmem:[%s1397] sm:$0xf]
      %v1399 = vld [vmem:[%s1397 + $0x4] sm:$0x3]
      %v1400 = vunpack.c.l.b16 %v1288
      %v1401 = vunpack.c.l.b16 %v1291
      %v1402 = vunpack.c.l.b16 %v1295
      %v1403 = vunpack.c.l.b16 %v1298
      %v1404 = vunpack.c.l.b16 %v1302
      %v1405 = vunpack.c.l.b16 %v1305
      %v1406 = vunpack.c.l.b16 %v1309
      %v1407 = vunpack.c.l.b16 %v1312
      %v1408 = vunpack.c.l.b16 %v1316
      %v1409 = vunpack.c.l.b16 %v1319
      %v1410 = vunpack.c.l.b16 %v1323
      %v1411 = vunpack.c.l.b16 %v1326
      %v1412 = vunpack.c.l.b16 %v1330
      %v1413 = vunpack.c.l.b16 %v1333
      %v1414 = vunpack.c.l.b16 %v1337
      %v1415 = vunpack.c.l.b16 %v1340
      %v1416 = vunpack.c.l.b16 %v1344
      %v1417 = vunpack.c.l.b16 %v1347
      %v1418 = vunpack.c.l.b16 %v1351
      %v1419 = vunpack.c.l.b16 %v1354
      %v1420 = vunpack.c.l.b16 %v1358
      %v1421 = vunpack.c.l.b16 %v1361
      %v1422 = vunpack.c.l.b16 %v1365
      %v1423 = vunpack.c.l.b16 %v1368
      %v1424 = vunpack.c.l.b16 %v1372
      %v1425 = vunpack.c.l.b16 %v1375
      %v1426 = vunpack.c.l.b16 %v1379
      %v1427 = vunpack.c.l.b16 %v1382
      %v1428 = vunpack.c.l.b16 %v1386
      %v1429 = vunpack.c.l.b16 %v1389
      %v1430 = vunpack.c.l.b16 %v1393
      %v1431 = vunpack.c.l.b16 %v1396
      %v1432 = vpack.c.b16 %v1401, %v1400
      %v1433 = vpack.c.b16 %v1403, %v1402
      %v1434 = vpack.c.b16 %v1405, %v1404
      %v1435 = vpack.c.b16 %v1407, %v1406
      %v1436 = vpack.c.b16 %v1409, %v1408
      %v1437 = vpack.c.b16 %v1411, %v1410
      %v1438 = vpack.c.b16 %v1413, %v1412
      %v1439 = vpack.c.b16 %v1415, %v1414
      %v1440 = vpack.c.b16 %v1417, %v1416
      %v1441 = vpack.c.b16 %v1419, %v1418
      %v1442 = vpack.c.b16 %v1421, %v1420
      %v1443 = vpack.c.b16 %v1423, %v1422
      %v1444 = vpack.c.b16 %v1425, %v1424
      %v1445 = vpack.c.b16 %v1427, %v1426
      %v1446 = vpack.c.b16 %v1429, %v1428
      %v1447 = vpack.c.b16 %v1431, %v1430
      %v1450 = vunpack.c.l.b16 %v1398
      %v1451 = vunpack.c.l.b16 %v1399
      %v1452 = vpack.c.b16 %v1451, %v1450
      %v1454 = vsel %vm723, %v1432, 0
      %v1457 = vsel %vm723, %v1433, 0
      %v1460 = vsel %vm723, %v1434, 0
      %v1463 = vsel %vm723, %v1435, 0
      %v1466 = vsel %vm723, %v1436, 0
      %v1469 = vsel %vm723, %v1437, 0
      %v1472 = vsel %vm723, %v1438, 0
      %v1475 = vsel %vm723, %v1439, 0
      %v1478 = vsel %vm723, %v1440, 0
      %v1481 = vsel %vm723, %v1441, 0
      %v1484 = vsel %vm723, %v1442, 0
      %v1487 = vsel %vm723, %v1443, 0
      %v1490 = vsel %vm723, %v1444, 0
      %v1493 = vsel %vm723, %v1445, 0
      %v1496 = vsel %vm723, %v1446, 0
      %v1499 = vsel %vm723, %v1447, 0
      %v1502 = vsel %vm772, %v1452, 0
      %1504 = vmatprep.subr.bf16.mxu0 0
      %1505 = vmatpush1.bf16.msra.mxu0 %v1502
      %1506 = vmatprep.subr.bf16.mxu0 0
      %1507 = vmatpush1.bf16.msra.mxu0 0
      %1508 = vmatprep.subr.bf16.mxu0 0
      %1509 = vmatpush1.bf16.msra.mxu0 0
      %1510 = vmatprep.subr.bf16.mxu0 0
      %1511 = vmatpush1.bf16.msra.mxu0 0
      %1512 = vmatprep.subr.bf16.mxu0 0
      %1513 = vmatpush1.bf16.msra.mxu0 0
      %1514 = vmatprep.subr.bf16.mxu0 0
      %1515 = vmatpush1.bf16.msra.mxu0 0
      %1516 = vmatprep.subr.bf16.mxu0 0
      %1517 = vmatpush1.bf16.msra.mxu0 0
      %1518 = vmatprep.subr.bf16.mxu0 0
      %1519 = vmatpush1.bf16.msra.mxu0 0
      %1520 = vmatprep.subr.bf16.mxu0 0
      %1521 = vmatpush1.bf16.msra.mxu0 0
      %1522 = vmatprep.subr.bf16.mxu0 0
      %1523 = vmatpush1.bf16.msra.mxu0 0
      %1524 = vmatprep.subr.bf16.mxu0 0
      %1525 = vmatpush1.bf16.msra.mxu0 0
      %1526 = vmatprep.subr.bf16.mxu0 0
      %1527 = vmatpush1.bf16.msra.mxu0 0
      %1528 = vmatprep.subr.bf16.mxu0 0
      %1529 = vmatpush1.bf16.msra.mxu0 0
      %1530 = vmatprep.subr.bf16.mxu0 0
      %1531 = vmatpush1.bf16.msra.mxu0 0
      %1532 = vmatprep.subr.bf16.mxu0 0
      %1533 = vmatpush1.bf16.msra.mxu0 0
      %1534 = vmatprep.subr.bf16.mxu0 0
      %1535 = vmatpush1.bf16.msra.mxu0 0
      %1536 = vmatprep.mubr.bf16.mxu0 0
      %1537 = vmatmul.mubr.bf16.gmra.mrb[0].mxu0 %v1454
      %v1538 = vpop.f32.mrb[0].mxu0
      %v1539 = vadd.f32 0.0, %v1538
      %v1540 = vpop.f32.mrb[0].mxu0
      %v1541 = vpop.f32.mrb[0].mxu0
      %v1542 = vadd.f32 0.0, %v1541
      %v1543 = vpop.f32.mrb[0].mxu0
      %1544 = vmatprep.mubr.bf16.mxu0 0
      %1545 = vmatmul.mubr.bf16.gmra.mrb[0].mxu0 %v1457
      %v1546 = vpop.f32.mrb[0].mxu0
      %v1547 = vadd.f32 0.0, %v1546
      %v1548 = vpop.f32.mrb[0].mxu0
      %v1549 = vpop.f32.mrb[0].mxu0
      %v1550 = vadd.f32 0.0, %v1549
      %v1551 = vpop.f32.mrb[0].mxu0
      %1552 = vmatprep.mubr.bf16.mxu0 0
      %1553 = vmatmul.mubr.bf16.gmra.mrb[0].mxu0 %v1460
      %v1554 = vpop.f32.mrb[0].mxu0
      %v1555 = vadd.f32 0.0, %v1554
      %v1556 = vpop.f32.mrb[0].mxu0
      %v1557 = vpop.f32.mrb[0].mxu0
      %v1558 = vadd.f32 0.0, %v1557
      %v1559 = vpop.f32.mrb[0].mxu0
      %1560 = vmatprep.mubr.bf16.mxu0 0
      %1561 = vmatmul.mubr.bf16.gmra.mrb[0].mxu0 %v1463
      %v1562 = vpop.f32.mrb[0].mxu0
      %v1563 = vadd.f32 0.0, %v1562
      %v1564 = vpop.f32.mrb[0].mxu0
      %v1565 = vpop.f32.mrb[0].mxu0
      %v1566 = vadd.f32 0.0, %v1565
      %v1567 = vpop.f32.mrb[0].mxu0
      %1568 = vmatprep.mubr.bf16.mxu0 0
      %1569 = vmatmul.mubr.bf16.gmra.mrb[0].mxu0 %v1466
      %v1570 = vpop.f32.mrb[0].mxu0
      %v1571 = vadd.f32 0.0, %v1570
      %v1572 = vpop.f32.mrb[0].mxu0
      %v1573 = vpop.f32.mrb[0].mxu0
      %v1574 = vadd.f32 0.0, %v1573
      %v1575 = vpop.f32.mrb[0].mxu0
      %1576 = vmatprep.mubr.bf16.mxu0 0
      %1577 = vmatmul.mubr.bf16.gmra.mrb[0].mxu0 %v1469
      %v1578 = vpop.f32.mrb[0].mxu0
      %v1579 = vadd.f32 0.0, %v1578
      %v1580 = vpop.f32.mrb[0].mxu0
      %v1581 = vpop.f32.mrb[0].mxu0
      %v1582 = vadd.f32 0.0, %v1581
      %v1583 = vpop.f32.mrb[0].mxu0
      %1584 = vmatprep.mubr.bf16.mxu0 0
      %1585 = vmatmul.mubr.bf16.gmra.mrb[0].mxu0 %v1472
      %v1586 = vpop.f32.mrb[0].mxu0
      %v1587 = vadd.f32 0.0, %v1586
      %v1588 = vpop.f32.mrb[0].mxu0
      %v1589 = vpop.f32.mrb[0].mxu0
      %v1590 = vadd.f32 0.0, %v1589
      %v1591 = vpop.f32.mrb[0].mxu0
      %1592 = vmatprep.mubr.bf16.mxu0 0
      %1593 = vmatmul.mubr.bf16.gmra.mrb[0].mxu0 %v1475
      %v1594 = vpop.f32.mrb[0].mxu0
      %v1595 = vadd.f32 0.0, %v1594
      %v1596 = vpop.f32.mrb[0].mxu0
      %v1597 = vpop.f32.mrb[0].mxu0
      %v1598 = vadd.f32 0.0, %v1597
      %v1599 = vpop.f32.mrb[0].mxu0
      %1600 = vmatprep.mubr.bf16.mxu0 0
      %1601 = vmatmul.mubr.bf16.gmra.mrb[0].mxu0 %v1478
      %v1602 = vpop.f32.mrb[0].mxu0
      %v1603 = vadd.f32 0.0, %v1602
      %v1604 = vpop.f32.mrb[0].mxu0
      %v1605 = vpop.f32.mrb[0].mxu0
      %v1606 = vadd.f32 0.0, %v1605
      %v1607 = vpop.f32.mrb[0].mxu0
      %1608 = vmatprep.mubr.bf16.mxu0 0
      %1609 = vmatmul.mubr.bf16.gmra.mrb[0].mxu0 %v1481
      %v1610 = vpop.f32.mrb[0].mxu0
      %v1611 = vadd.f32 0.0, %v1610
      %v1612 = vpop.f32.mrb[0].mxu0
      %v1613 = vpop.f32.mrb[0].mxu0
      %v1614 = vadd.f32 0.0, %v1613
      %v1615 = vpop.f32.mrb[0].mxu0
      %1616 = vmatprep.mubr.bf16.mxu0 0
      %1617 = vmatmul.mubr.bf16.gmra.mrb[0].mxu0 %v1484
      %v1618 = vpop.f32.mrb[0].mxu0
      %v1619 = vadd.f32 0.0, %v1618
      %v1620 = vpop.f32.mrb[0].mxu0
      %v1621 = vpop.f32.mrb[0].mxu0
      %v1622 = vadd.f32 0.0, %v1621
      %v1623 = vpop.f32.mrb[0].mxu0
      %1624 = vmatprep.mubr.bf16.mxu0 0
      %1625 = vmatmul.mubr.bf16.gmra.mrb[0].mxu0 %v1487
      %v1626 = vpop.f32.mrb[0].mxu0
      %v1627 = vadd.f32 0.0, %v1626
      %v1628 = vpop.f32.mrb[0].mxu0
      %v1629 = vpop.f32.mrb[0].mxu0
      %v1630 = vadd.f32 0.0, %v1629
      %v1631 = vpop.f32.mrb[0].mxu0
      %1632 = vmatprep.mubr.bf16.mxu0 0
      %1633 = vmatmul.mubr.bf16.gmra.mrb[0].mxu0 %v1490
      %v1634 = vpop.f32.mrb[0].mxu0
      %v1635 = vadd.f32 0.0, %v1634
      %v1636 = vpop.f32.mrb[0].mxu0
      %v1637 = vpop.f32.mrb[0].mxu0
      %v1638 = vadd.f32 0.0, %v1637
      %v1639 = vpop.f32.mrb[0].mxu0
      %1640 = vmatprep.mubr.bf16.mxu0 0
      %1641 = vmatmul.mubr.bf16.gmra.mrb[0].mxu0 %v1493
      %v1642 = vpop.f32.mrb[0].mxu0
      %v1643 = vadd.f32 0.0, %v1642
      %v1644 = vpop.f32.mrb[0].mxu0
      %v1645 = vpop.f32.mrb[0].mxu0
      %v1646 = vadd.f32 0.0, %v1645
      %v1647 = vpop.f32.mrb[0].mxu0
      %1648 = vmatprep.mubr.bf16.mxu0 0
      %1649 = vmatmul.mubr.bf16.gmra.mrb[0].mxu0 %v1496
      %v1650 = vpop.f32.mrb[0].mxu0
      %v1651 = vadd.f32 0.0, %v1650
      %v1652 = vpop.f32.mrb[0].mxu0
      %v1653 = vpop.f32.mrb[0].mxu0
      %v1654 = vadd.f32 0.0, %v1653
      %v1655 = vpop.f32.mrb[0].mxu0
      %1656 = vmatprep.mubr.bf16.mxu0 0
      %1657 = vmatmul.mubr.bf16.gmra.mrb[0].mxu0 %v1499
      %v1658 = vpop.f32.mrb[0].mxu0
      %v1659 = vadd.f32 0.0, %v1658
      %v1660 = vpop.f32.mrb[0].mxu0
      %v1661 = vpop.f32.mrb[0].mxu0
      %v1662 = vadd.f32 0.0, %v1661
      %v1663 = vpop.f32.mrb[0].mxu0
      %1664 = vdwg.mxu0
      %v1665 = vadd.f32 %v1108, %v1539
      %v1666 = vadd.f32 %v1111, %v1542
      %v1667 = vadd.f32 %v1116, %v1547
      %v1668 = vadd.f32 %v1119, %v1550
      %v1669 = vadd.f32 %v1124, %v1555
      %v1670 = vadd.f32 %v1127, %v1558
      %v1671 = vadd.f32 %v1132, %v1563
      %v1672 = vadd.f32 %v1135, %v1566
      %v1673 = vadd.f32 %v1140, %v1571
      %v1674 = vadd.f32 %v1143, %v1574
      %v1675 = vadd.f32 %v1148, %v1579
      %v1676 = vadd.f32 %v1151, %v1582
      %v1677 = vadd.f32 %v1156, %v1587
      %v1678 = vadd.f32 %v1159, %v1590
      %v1679 = vadd.f32 %v1164, %v1595
      %v1680 = vadd.f32 %v1167, %v1598
      %v1681 = vadd.f32 %v1172, %v1603
      %v1682 = vadd.f32 %v1175, %v1606
      %v1683 = vadd.f32 %v1180, %v1611
      %v1684 = vadd.f32 %v1183, %v1614
      %v1685 = vadd.f32 %v1188, %v1619
      %v1686 = vadd.f32 %v1191, %v1622
      %v1687 = vadd.f32 %v1196, %v1627
      %v1688 = vadd.f32 %v1199, %v1630
      %v1689 = vadd.f32 %v1204, %v1635
      %v1690 = vadd.f32 %v1207, %v1638
      %v1691 = vadd.f32 %v1212, %v1643
      %v1692 = vadd.f32 %v1215, %v1646
      %v1693 = vadd.f32 %v1220, %v1651
      %v1694 = vadd.f32 %v1223, %v1654
      %v1695 = vadd.f32 %v1228, %v1659
      %v1696 = vadd.f32 %v1231, %v1662
      %v1697 = vpack.c.bf16 %v1666, %v1665
      %v1698 = vpack.c.bf16 %v1668, %v1667
      %v1699 = vpack.c.bf16 %v1670, %v1669
      %v1700 = vpack.c.bf16 %v1672, %v1671
      %v1701 = vpack.c.bf16 %v1674, %v1673
      %v1702 = vpack.c.bf16 %v1676, %v1675
      %v1703 = vpack.c.bf16 %v1678, %v1677
      %v1704 = vpack.c.bf16 %v1680, %v1679
      %v1705 = vpack.c.bf16 %v1682, %v1681
      %v1706 = vpack.c.bf16 %v1684, %v1683
      %v1707 = vpack.c.bf16 %v1686, %v1685
      %v1708 = vpack.c.bf16 %v1688, %v1687
      %v1709 = vpack.c.bf16 %v1690, %v1689
      %v1710 = vpack.c.bf16 %v1692, %v1691
      %v1711 = vpack.c.bf16 %v1694, %v1693
      %v1712 = vpack.c.bf16 %v1696, %v1695
      %v1729 = vunpack.c.l.b16 %v1697
      %v1730 = vunpack.c.h.b16 %v1697
      %v1731 = vunpack.c.l.b16 %v1698
      %v1732 = vunpack.c.h.b16 %v1698
      %v1733 = vunpack.c.l.b16 %v1699
      %v1734 = vunpack.c.h.b16 %v1699
      %v1735 = vunpack.c.l.b16 %v1700
      %v1736 = vunpack.c.h.b16 %v1700
      %v1737 = vunpack.c.l.b16 %v1701
      %v1738 = vunpack.c.h.b16 %v1701
      %v1739 = vunpack.c.l.b16 %v1702
      %v1740 = vunpack.c.h.b16 %v1702
      %v1741 = vunpack.c.l.b16 %v1703
      %v1742 = vunpack.c.h.b16 %v1703
      %v1743 = vunpack.c.l.b16 %v1704
      %v1744 = vunpack.c.h.b16 %v1704
      %v1745 = vunpack.c.l.b16 %v1705
      %v1746 = vunpack.c.h.b16 %v1705
      %v1747 = vunpack.c.l.b16 %v1706
      %v1748 = vunpack.c.h.b16 %v1706
      %v1749 = vunpack.c.l.b16 %v1707
      %v1750 = vunpack.c.h.b16 %v1707
      %v1751 = vunpack.c.l.b16 %v1708
      %v1752 = vunpack.c.h.b16 %v1708
      %v1753 = vunpack.c.l.b16 %v1709
      %v1754 = vunpack.c.h.b16 %v1709
      %v1755 = vunpack.c.l.b16 %v1710
      %v1756 = vunpack.c.h.b16 %v1710
      %v1757 = vunpack.c.l.b16 %v1711
      %v1758 = vunpack.c.h.b16 %v1711
      %v1759 = vunpack.c.l.b16 %v1712
      %v1760 = vunpack.c.h.b16 %v1712
      %v1761 = vpack.c.b16 %v1729, %v1729
      %v1762 = vpack.c.b16 %v1730, %v1730
      %v1763 = vpack.c.b16 %v1731, %v1731
      %v1764 = vpack.c.b16 %v1732, %v1732
      %v1765 = vpack.c.b16 %v1733, %v1733
      %v1766 = vpack.c.b16 %v1734, %v1734
      %v1767 = vpack.c.b16 %v1735, %v1735
      %v1768 = vpack.c.b16 %v1736, %v1736
      %v1769 = vpack.c.b16 %v1737, %v1737
      %v1770 = vpack.c.b16 %v1738, %v1738
      %v1771 = vpack.c.b16 %v1739, %v1739
      %v1772 = vpack.c.b16 %v1740, %v1740
      %v1773 = vpack.c.b16 %v1741, %v1741
      %v1774 = vpack.c.b16 %v1742, %v1742
      %v1775 = vpack.c.b16 %v1743, %v1743
      %v1776 = vpack.c.b16 %v1744, %v1744
      %v1777 = vpack.c.b16 %v1745, %v1745
      %v1778 = vpack.c.b16 %v1746, %v1746
      %v1779 = vpack.c.b16 %v1747, %v1747
      %v1780 = vpack.c.b16 %v1748, %v1748
      %v1781 = vpack.c.b16 %v1749, %v1749
      %v1782 = vpack.c.b16 %v1750, %v1750
      %v1783 = vpack.c.b16 %v1751, %v1751
      %v1784 = vpack.c.b16 %v1752, %v1752
      %v1785 = vpack.c.b16 %v1753, %v1753
      %v1786 = vpack.c.b16 %v1754, %v1754
      %v1787 = vpack.c.b16 %v1755, %v1755
      %v1788 = vpack.c.b16 %v1756, %v1756
      %v1789 = vpack.c.b16 %v1757, %v1757
      %v1790 = vpack.c.b16 %v1758, %v1758
      %v1791 = vpack.c.b16 %v1759, %v1759
      %v1792 = vpack.c.b16 %v1760, %v1760
      %1825 = vst [vmem:[%s221] sm:$0xf] %v1761
      %1826 = vst [vmem:[%s221 + $0x4] sm:$0xf] %v1762
      %1827 = vst [vmem:[%s221 + $0x8] sm:$0xf] %v1763
      %1828 = vst [vmem:[%s221 + $0xc] sm:$0xf] %v1764
      %1829 = vst [vmem:[%s221 + $0x10] sm:$0xf] %v1765
      %1830 = vst [vmem:[%s221 + $0x14] sm:$0xf] %v1766
      %1831 = vst [vmem:[%s221 + $0x18] sm:$0xf] %v1767
      %1832 = vst [vmem:[%s221 + $0x1c] sm:$0xf] %v1768
      %1833 = vst [vmem:[%s221 + $0x20] sm:$0xf] %v1769
      %1834 = vst [vmem:[%s221 + $0x24] sm:$0xf] %v1770
      %1835 = vst [vmem:[%s221 + $0x28] sm:$0xf] %v1771
      %1836 = vst [vmem:[%s221 + $0x2c] sm:$0xf] %v1772
      %1837 = vst [vmem:[%s221 + $0x30] sm:$0xf] %v1773
      %1838 = vst [vmem:[%s221 + $0x34] sm:$0xf] %v1774
      %1839 = vst [vmem:[%s221 + $0x38] sm:$0xf] %v1775
      %1840 = vst [vmem:[%s221 + $0x3c] sm:$0xf] %v1776
      %1841 = vst [vmem:[%s221 + $0x40] sm:$0xf] %v1777
      %1842 = vst [vmem:[%s221 + $0x44] sm:$0xf] %v1778
      %1843 = vst [vmem:[%s221 + $0x48] sm:$0xf] %v1779
      %1844 = vst [vmem:[%s221 + $0x4c] sm:$0xf] %v1780
      %1845 = vst [vmem:[%s221 + $0x50] sm:$0xf] %v1781
      %1846 = vst [vmem:[%s221 + $0x54] sm:$0xf] %v1782
      %1847 = vst [vmem:[%s221 + $0x58] sm:$0xf] %v1783
      %1848 = vst [vmem:[%s221 + $0x5c] sm:$0xf] %v1784
      %1849 = vst [vmem:[%s221 + $0x60] sm:$0xf] %v1785
      %1850 = vst [vmem:[%s221 + $0x64] sm:$0xf] %v1786
      %1851 = vst [vmem:[%s221 + $0x68] sm:$0xf] %v1787
      %1852 = vst [vmem:[%s221 + $0x6c] sm:$0xf] %v1788
      %1853 = vst [vmem:[%s221 + $0x70] sm:$0xf] %v1789
      %1854 = vst [vmem:[%s221 + $0x74] sm:$0xf] %v1790
      %1855 = vst [vmem:[%s221 + $0x78] sm:$0xf] %v1791
      %1856 = vst [vmem:[%s221 + $0x7c] sm:$0xf] %v1792
      %v1857 = vadd.f32 %v1665, %v1666
      %v1858 = vadd.f32 %v1857, %v1667
      %v1859 = vadd.f32 %v1858, %v1668
      %v1860 = vadd.f32 %v1859, %v1669
      %v1861 = vadd.f32 %v1860, %v1670
      %v1862 = vadd.f32 %v1861, %v1671
      %v1863 = vadd.f32 %v1862, %v1672
      %v1864 = vadd.f32 %v1863, %v1673
      %v1865 = vadd.f32 %v1864, %v1674
      %v1866 = vadd.f32 %v1865, %v1675
      %v1867 = vadd.f32 %v1866, %v1676
      %v1868 = vadd.f32 %v1867, %v1677
      %v1869 = vadd.f32 %v1868, %v1678
      %v1870 = vadd.f32 %v1869, %v1679
      %v1871 = vadd.f32 %v1870, %v1680
      %v1872 = vadd.f32 %v1871, %v1681
      %v1873 = vadd.f32 %v1872, %v1682
      %v1874 = vadd.f32 %v1873, %v1683
      %v1875 = vadd.f32 %v1874, %v1684
      %v1876 = vadd.f32 %v1875, %v1685
      %v1877 = vadd.f32 %v1876, %v1686
      %v1878 = vadd.f32 %v1877, %v1687
      %v1879 = vadd.f32 %v1878, %v1688
      %v1880 = vadd.f32 %v1879, %v1689
      %v1881 = vadd.f32 %v1880, %v1690
      %v1882 = vadd.f32 %v1881, %v1691
      %v1883 = vadd.f32 %v1882, %v1692
      %v1884 = vadd.f32 %v1883, %v1693
      %v1885 = vadd.f32 %v1884, %v1694
      %v1886 = vadd.f32 %v1885, %v1695
      %v1887 = vadd.f32 %v1886, %v1696
      %v1888 = vrot.slane %v1887, 4
      %v1889 = vadd.f32 %v1887, %v1888
      %v1890 = vrot.slane %v1889, 2
      %v1891 = vadd.f32 %v1889, %v1890
      %v1892 = vrot.slane %v1891, 1
      %v1893 = vadd.f32 %v1891, %v1892
      %1894 = vst [vmem:[%s227] sm:$0x1] %v1893
      %v1895 = vmul.f32 %v1665, %v1665
      %v1896 = vmul.f32 %v1666, %v1666
      %v1897 = vmul.f32 %v1667, %v1667
      %v1898 = vmul.f32 %v1668, %v1668
      %v1899 = vmul.f32 %v1669, %v1669
      %v1900 = vmul.f32 %v1670, %v1670
      %v1901 = vmul.f32 %v1671, %v1671
      %v1902 = vmul.f32 %v1672, %v1672
      %v1903 = vmul.f32 %v1673, %v1673
      %v1904 = vmul.f32 %v1674, %v1674
      %v1905 = vmul.f32 %v1675, %v1675
      %v1906 = vmul.f32 %v1676, %v1676
      %v1907 = vmul.f32 %v1677, %v1677
      %v1908 = vmul.f32 %v1678, %v1678
      %v1909 = vmul.f32 %v1679, %v1679
      %v1910 = vmul.f32 %v1680, %v1680
      %v1911 = vmul.f32 %v1681, %v1681
      %v1912 = vmul.f32 %v1682, %v1682
      %v1913 = vmul.f32 %v1683, %v1683
      %v1914 = vmul.f32 %v1684, %v1684
      %v1915 = vmul.f32 %v1685, %v1685
      %v1916 = vmul.f32 %v1686, %v1686
      %v1917 = vmul.f32 %v1687, %v1687
      %v1918 = vmul.f32 %v1688, %v1688
      %v1919 = vmul.f32 %v1689, %v1689
      %v1920 = vmul.f32 %v1690, %v1690
      %v1921 = vmul.f32 %v1691, %v1691
      %v1922 = vmul.f32 %v1692, %v1692
      %v1923 = vmul.f32 %v1693, %v1693
      %v1924 = vmul.f32 %v1694, %v1694
      %v1925 = vmul.f32 %v1695, %v1695
      %v1926 = vmul.f32 %v1696, %v1696
      %v1927 = vadd.f32 %v1895, %v1896
      %v1928 = vadd.f32 %v1927, %v1897
      %v1929 = vadd.f32 %v1928, %v1898
      %v1930 = vadd.f32 %v1929, %v1899
      %v1931 = vadd.f32 %v1930, %v1900
      %v1932 = vadd.f32 %v1931, %v1901
      %v1933 = vadd.f32 %v1932, %v1902
      %v1934 = vadd.f32 %v1933, %v1903
      %v1935 = vadd.f32 %v1934, %v1904
      %v1936 = vadd.f32 %v1935, %v1905
      %v1937 = vadd.f32 %v1936, %v1906
      %v1938 = vadd.f32 %v1937, %v1907
      %v1939 = vadd.f32 %v1938, %v1908
      %v1940 = vadd.f32 %v1939, %v1909
      %v1941 = vadd.f32 %v1940, %v1910
      %v1942 = vadd.f32 %v1941, %v1911
      %v1943 = vadd.f32 %v1942, %v1912
      %v1944 = vadd.f32 %v1943, %v1913
      %v1945 = vadd.f32 %v1944, %v1914
      %v1946 = vadd.f32 %v1945, %v1915
      %v1947 = vadd.f32 %v1946, %v1916
      %v1948 = vadd.f32 %v1947, %v1917
      %v1949 = vadd.f32 %v1948, %v1918
      %v1950 = vadd.f32 %v1949, %v1919
      %v1951 = vadd.f32 %v1950, %v1920
      %v1952 = vadd.f32 %v1951, %v1921
      %v1953 = vadd.f32 %v1952, %v1922
      %v1954 = vadd.f32 %v1953, %v1923
      %v1955 = vadd.f32 %v1954, %v1924
      %v1956 = vadd.f32 %v1955, %v1925
      %v1957 = vadd.f32 %v1956, %v1926
      %v1958 = vrot.slane %v1957, 4
      %v1959 = vadd.f32 %v1957, %v1958
      %v1960 = vrot.slane %v1959, 2
      %v1961 = vadd.f32 %v1959, %v1960
      %v1962 = vrot.slane %v1961, 1
      %v1963 = vadd.f32 %v1961, %v1962
      %1964 = vst [vmem:[%s227 + $0x1] sm:$0x1] %v1963
      %s1965 = smul.u32 32, %s20
      %p1966 = scmp.lt.s32.totalorder %s19, 1
      %s1967 = scalar_select %p1966, %s19, 1
      %p1968 = scmp.lt.s32.totalorder %s1965, 31
      %s1969 = scalar_select %p1968, %s1965, 31
      %s1970 = smul.addr %s1967, 32
      %s1971 = sadd.s32 %s1969, %s1970
      %s1972 = smul.addr %s1971, 4
      %s1973 = scalar_lea.vmem %s2, %s1972
      %s1974 = sadd.s32 %s19, %s20
      %p1975 = scmp.lt.s32.totalorder %s1974, 1
      %s1976 = scalar_select %p1975, %s1974, 1
      %s1977 = smul.addr %s1976, 2
      %s1978 = scalar_lea.vmem %s3, %s1977
      // Predicated region
      $region29: #{vgg16_conv_block.2} parent=27 // pred_check
        %p1979 = pneg %p96
      $region30: #{vgg16_conv_block.2} parent=27 // pred_check_branch
        %1981 = sbr.rel (%p1979) target = $region32
      $region31: #{vgg16_conv_block.2} parent=27 // pred_region
        %s1982 = smul.u32 32, %s20
      $region32: #{vgg16_conv_block.2} parent=27 // pred_fallthru
        _
      // Predicated region
      $region33: #{vgg16_conv_block.2} parent=27 // pred_check
        %p1983 = pneg %p124
      $region34: #{vgg16_conv_block.2} parent=27 // pred_check_branch
        %1985 = sbr.rel (%p1983) target = $region36
      $region35: #{vgg16_conv_block.2} parent=27 // pred_region
        %s1986 = sadd.s32 %s19, %s20
      $region36: #{vgg16_conv_block.2} parent=27 // pred_fallthru
        _
    $region28: #{vgg16_conv_block.2} parent=5 // pred_fallthru
      _
    %p1987 = scmp.le.s32.totalorder 2, %s10
    // Predicated region
    $region37: #{vgg16_conv_block.2} parent=5 // pred_check
      %p1988 = pneg %p1987
    $region38: #{vgg16_conv_block.2} parent=5 // pred_check_branch
      %1990 = sbr.rel (%p1988) target = $region40
    $region39: #{vgg16_conv_block.2} parent=5 // pred_region
      %s1991 = ssub.s32 %s10, 2
      // Predicated region
      $region41: #{vgg16_conv_block.2} parent=39 // pred_check
        %p1992 = pneg %p102
      $region42: #{vgg16_conv_block.2} parent=39 // pred_check_branch
        %1994 = sbr.rel (%p1992) target = $region44
      $region43: #{vgg16_conv_block.2} parent=39 // pred_region
        %s1995 = smul.u32 32, %s22
        %p1996 = scmp.lt.s32.totalorder %s21, 1
        %s1997 = scalar_select %p1996, %s21, 1
        %p1998 = scmp.lt.s32.totalorder %s1995, 31
        %s1999 = scalar_select %p1998, %s1995, 31
        %s2000 = smul.addr %s1997, 32
        %s2001 = sadd.s32 %s1999, %s2000
        %s2002 = smul.addr %s2001, 4
        %s2003 = scalar_lea.vmem %s2, %s2002
      $region44: #{vgg16_conv_block.2} parent=39 // pred_fallthru
        _
      // Predicated region
      $region45: #{vgg16_conv_block.2} parent=39 // pred_check
        %p2004 = pneg %p130
      $region46: #{vgg16_conv_block.2} parent=39 // pred_check_branch
        %2006 = sbr.rel (%p2004) target = $region48
      $region47: #{vgg16_conv_block.2} parent=39 // pred_region
        %s2007 = sadd.s32 %s21, %s22
        %p2008 = scmp.lt.s32.totalorder %s2007, 1
        %s2009 = scalar_select %p2008, %s2007, 1
        %s2010 = smul.addr %s2009, 2
        %s2011 = scalar_lea.vmem %s3, %s2010
      $region48: #{vgg16_conv_block.2} parent=39 // pred_fallthru
        _
    $region40: #{vgg16_conv_block.2} parent=5 // pred_fallthru
      _
  $region6: #{vgg16_conv_block.2} parent=0 // loop_footer
    %s14 = sadd.s32 1, %s10
  $region7: #{vgg16_conv_block.2} parent=0 // loop_footer_branch
    %9 = sbr.rel target = $region3
  $region8: #{vgg16_conv_block.2} parent=0 // loop_exit
    _

</llo_original>
